<compile_context>
chip_gen: v6e
topology: v6e:2x2x1
jax: 0.10.0
libtpu: 0.0.40
codegen_flags: <defaults>
</compile_context>

<pallas_src>
import functools

import jax
import jax.numpy as jnp
import numpy as np
from jax import lax
from jax.experimental import pallas as pl
from jax.experimental.pallas import tpu as pltpu

EPS = 1e-5  # PyTorch BatchNorm2d default eps


# ----------------------------------------------------------------------------
# Pallas kernel
# ----------------------------------------------------------------------------
def st_attn_kernel(x1_ref, x2_ref,          # (C, N) f32 per-batch blocks
                   w1_ref, b1_ref,          # fused [theta | W·g | ones-gen] for x1: (R, C), (R, 1)
                   w2_ref, b2_ref,          # fused [phi   | W·g | ones-gen] for x2: (R, C), (R, 1)
                   bo_ref,                  # W-module output bias (BN folded): (C, 1)
                   o1_ref, o2_ref,          # (C, N) bf16 resident, (C, TQ) bf16 per tile
                   kv2_ref,                 # scratch (R, N) bf16: phi keys | (W·g)(x2) vals | ones
                   m_ref,                   # scratch (1, 1) f32: running scalar max
                   acc_ref,                 # scratch (CV, N) f32: y1 rows + colsum row (+pad)
                   *, ck, C):
    t = pl.program_id(1)
    n_tiles = pl.num_programs(1)
    TQ = o2_ref.shape[1]

    # ---- per-batch init: project the full x2 once; reset flash accumulators ----
    @pl.when(t == 0)
    def _init():
        kv2 = jnp.dot(w2_ref[...], x2_ref[...],
                      preferred_element_type=jnp.float32) + b2_ref[...]      # (R, N) f32
        kv2_ref[...] = kv2.astype(jnp.bfloat16)
        m_ref[...] = jnp.full(m_ref.shape, -jnp.inf, jnp.float32)
        acc_ref[...] = jnp.zeros(acc_ref.shape, jnp.float32)

    # ---- per-tile fused theta | (W·g) | ones projection of the x1 query tile ----
    start = pl.multiple_of(t * TQ, TQ)
    x1_t = x1_ref[:, pl.ds(start, TQ)]                                       # (C, TQ) f32
    tg1 = jnp.dot(w1_ref[...], x1_t,
                  preferred_element_type=jnp.float32) + b1_ref[...]          # (R, TQ) f32
    th1 = tg1[:ck, :].astype(jnp.bfloat16)                                   # (ck, TQ) theta(x1)
    gv1 = tg1[ck:, :].astype(jnp.bfloat16)                                   # (CV, TQ) vals | ones

    # ---- energy tile E[n1-in-tile, n2]; contract dim 0 of both (no transpose) ----
    e = lax.dot_general(th1, kv2_ref[:ck, :], (((0,), (0,)), ((), ())),
                        preferred_element_type=jnp.float32)                  # (TQ, N) f32

    m_old = m_ref[...]                                                       # (1, 1)
    m_tile = jnp.max(jnp.max(e, axis=1, keepdims=True), axis=0, keepdims=True)
    m_new = jnp.maximum(m_old, m_tile)
    p = jnp.exp(e - m_new)                    # single shared exp (EUP) for both branches
    p_bf = p.astype(jnp.bfloat16)

    # ---- branch 1 (tile-local softmax over n2): value dot + rowsum in ONE MXU pass ----
    y2p = lax.dot_general(kv2_ref[ck:, :], p_bf, (((1,), (1,)), ((), ())),
                          preferred_element_type=jnp.float32)                # (CV, TQ)
    inv_row = 1.0 / y2p[C:C + 1, :]                                          # (1, TQ) exact recip
    x2_t = x2_ref[:, pl.ds(start, TQ)]                                       # (C, TQ) f32
    o2_ref[...] = (x2_t + y2p[:C, :] * inv_row + bo_ref[...]).astype(o2_ref.dtype)

    # ---- branch 2 (flash accumulation over n1 tiles): softmax over n1 ----
    # y1 rows + colsum row share one accumulator and a single alpha rescale pass
    # (unconditional: small VPU pass, fully hidden under the EUP exp).
    alpha = jnp.exp(m_old - m_new)                                           # (1, 1)
    acc_ref[...] = acc_ref[...] * alpha + lax.dot_general(
        gv1, p_bf, (((1,), (0,)), ((), ())), preferred_element_type=jnp.float32)
    m_ref[...] = m_new

    # ---- finalize o1 on the last tile (resident output block, written once) ----
    @pl.when(t == n_tiles - 1)
    def _finalize():
        inv_col = 1.0 / acc_ref[C:C + 1, :]                                  # (1, N) exact recip
        o1_ref[...] = (x1_ref[...] + acc_ref[:C, :] * inv_col
                       + bo_ref[...]).astype(o1_ref.dtype)


# ----------------------------------------------------------------------------
# Wrapper: layout plumbing + pallas_call
# ----------------------------------------------------------------------------
def _pick_vmem_limit():
    # ~96 MiB on v5e/v6e (128 MiB physical VMEM), ~48 MiB on v7x (64 MiB physical).
    try:
        cap = int(pltpu.get_tpu_info().vmem_capacity_bytes)
        return max(32 * 1024 * 1024, min(cap - 16 * 1024 * 1024, 96 * 1024 * 1024))
    except Exception:
        return 40 * 1024 * 1024


def spatiotemporal_attention(x1, x2, folded, *, tile_q=None):
    """x1, x2: (B, C, H, W) float32.  Returns (o1, o2) in bfloat16 (intentional perf contract)."""
    B, C, H, W = x1.shape
    N = H * W
    ck = int(folded["ck"])
    R = folded["w1"].shape[0]
    cv = R - ck

    vmem_limit = _pick_vmem_limit()
    if tile_q is None:
        # TQ=256 fills the MXU M-dim and halves grid steps on v5e/v6e; keep 128 on v7x (64 MiB VMEM).
        tile_q = 256 if vmem_limit >= 64 * 1024 * 1024 else 128
    if N % tile_q == 0 and tile_q % 128 == 0:
        tq = tile_q
    elif N % 128 == 0:
        tq = 128
    else:
        tq = N
    n_tiles = N // tq

    # NCHW -> (B, C, N) is a pure reshape; inputs stay f32 (no wrapper-side cast / HBM pass).
    x1_f = x1.reshape(B, C, N)
    x2_f = x2.reshape(B, C, N)

    full_x = pl.BlockSpec((None, C, N), lambda b, t: (b, 0, 0))
    o1_spec = pl.BlockSpec((None, C, N), lambda b, t: (b, 0, 0))   # resident; written at finalize
    o2_spec = pl.BlockSpec((None, C, tq), lambda b, t: (b, 0, t))  # lane-dense tiles

    def const(arr):
        return pl.BlockSpec(arr.shape, lambda b, t: (0, 0))

    kernel = functools.partial(st_attn_kernel, ck=ck, C=C)

    grid_spec = pltpu.PrefetchScalarGridSpec(
        num_scalar_prefetch=0,
        grid=(B, n_tiles),
        in_specs=[full_x, full_x,
                  const(folded["w1"]), const(folded["b1"]),
                  const(folded["w2"]), const(folded["b2"]),
                  const(folded["bo"])],
        out_specs=[o1_spec, o2_spec],
        scratch_shapes=[
            pltpu.VMEM((R, N), jnp.bfloat16),    # phi(x2) keys | (W·g)(x2) values | ones
            pltpu.VMEM((1, 1), jnp.float32),     # running scalar max
            pltpu.VMEM((cv, N), jnp.float32),    # y1 accumulator rows + colsum row
        ],
    )

    o1, o2 = pl.pallas_call(
        kernel,
        out_shape=(jax.ShapeDtypeStruct((B, C, N), jnp.bfloat16),
                   jax.ShapeDtypeStruct((B, C, N), jnp.bfloat16)),
        grid_spec=grid_spec,
        compiler_params=pltpu.CompilerParams(
            dimension_semantics=("parallel", "arbitrary"),
            vmem_limit_bytes=vmem_limit,
        ),
    )(x1_f, x2_f,
      folded["w1"], folded["b1"],
      folded["w2"], folded["b2"],
      folded["bo"])

    return o1.reshape(B, C, H, W), o2.reshape(B, C, H, W)


# ----------------------------------------------------------------------------
# Deterministic parameter init (matches nn.Module __init__ shapes) + folding
# ----------------------------------------------------------------------------
def init_params(key, C, Ci):
    ks = jax.random.split(key, 20)

    def bn(k):
        k1, k2, k3, k4 = jax.random.split(k, 4)
        return dict(
            gamma=jax.random.uniform(k1, (C,), jnp.float32, 0.5, 1.5),
            beta=jax.random.normal(k2, (C,), jnp.float32) * 0.1,
            mean=jax.random.normal(k3, (C,), jnp.float32) * 0.1,
            var=jax.random.uniform(k4, (C,), jnp.float32, 0.5, 1.5),
        )

    p = {}
    for i, name in enumerate(("g", "theta", "phi")):
        p[name + "_bn"] = bn(ks[i])
        p[name + "_w"] = jax.random.normal(ks[3 + i], (Ci, C), jnp.float32) * 0.2
        p[name + "_b"] = jax.random.normal(ks[6 + i], (Ci,), jnp.float32) * 0.05
    p["W_w"] = jax.random.normal(ks[9], (C, Ci), jnp.float32) * 0.2
    p["W_b"] = jax.random.normal(ks[10], (C,), jnp.float32) * 0.05
    p["W_bn"] = bn(ks[11])
    return p


def fold_params(p):
    """Fold eval-mode BN into the 1x1 convs, fold W's conv into the g branch, and fuse
    [theta | W·g | ones-gen] / [phi | W·g | ones-gen] into single projection matrices."""
    def bn_affine(bn):
        s = bn["gamma"] / jnp.sqrt(bn["var"] + EPS)
        return s, bn["beta"] - bn["mean"] * s

    def fold_bn_then_conv(bn, w, b):            # conv1x1(BN(x)); w: (Cout, Cin)
        s, t = bn_affine(bn)
        return w * s[None, :], w @ t + b

    def fold_conv_then_bn(w, b, bn):            # BN(conv1x1(y)); w: (Cout, Cin)
        s, t = bn_affine(bn)
        return w * s[:, None], b * s + t

    th_w, th_b = fold_bn_then_conv(p["theta_bn"], p["theta_w"], p["theta_b"])
    ph_w, ph_b = fold_bn_then_conv(p["phi_bn"], p["phi_w"], p["phi_b"])
    g_w, g_b = fold_bn_then_conv(p["g_bn"], p["g_w"], p["g_b"])
    wo_w, wo_b = fold_conv_then_bn(p["W_w"], p["W_b"], p["W_bn"])

    # W(y) = wo_w @ (g-values @ softmax) + wo_b.  Softmax columns sum to 1, so the bias
    # passes through exactly: wo_w folds into the g branch, only wo_b remains at the output.
    gW_w = wo_w @ g_w                                   # (C, C)
    gW_b = wo_w @ g_b                                   # (C,)

    Ci, C = th_w.shape
    ck = Ci + (Ci % 2)               # query/key rows padded to even (bf16 sublane pairs)
    cv = ((C + 2) // 2) * 2          # [values | ones-gen | pad] rows, padded to even
    R = ck + cv

    def stack(qw, qb):
        w = jnp.zeros((R, C), jnp.float32)
        b = jnp.zeros((R,), jnp.float32)
        w = w.at[:Ci].set(qw).at[ck:ck + C].set(gW_w)
        b = b.at[:Ci].set(qb).at[ck:ck + C].set(gW_b).at[ck + C].set(1.0)  # ones-generator row
        return w, b[:, None]

    w1, b1 = stack(th_w, th_b)
    w2, b2 = stack(ph_w, ph_b)
    return {"w1": w1, "b1": b1, "w2": w2, "b2": b2,
            "bo": wo_b[:, None].astype(jnp.float32), "ck": ck}


# ----------------------------------------------------------------------------
# Pure-JAX reference mirroring the PyTorch forward (eval-mode BN)
# ----------------------------------------------------------------------------
def reference(x1, x2, p):
    def bn(x, b):
        s = b["gamma"] / jnp.sqrt(b["var"] + EPS)
        t = b["beta"] - b["mean"] * s
        return x * s[None, :, None, None] + t[None, :, None, None]

    def conv1x1(x, w, bias):
        return jnp.einsum("bchw,oc->bohw", x, w) + bias[None, :, None, None]

    def g(x):     return conv1x1(bn(x, p["g_bn"]), p["g_w"], p["g_b"])
    def theta(x): return conv1x1(bn(x, p["theta_bn"]), p["theta_w"], p["theta_b"])
    def phi(x):   return conv1x1(bn(x, p["phi_bn"]), p["phi_w"], p["phi_b"])
    def Wmod(y):  return bn(conv1x1(y, p["W_w"], p["W_b"]), p["W_bn"])

    B, C, H, Wd = x1.shape
    Ci = p["g_w"].shape[0]
    g_x11 = g(x1).reshape(B, Ci, -1)
    g_x21 = g(x2).reshape(B, Ci, -1)
    theta_x1 = theta(x1).reshape(B, Ci, -1)
    theta_x2 = jnp.transpose(theta_x1, (0, 2, 1))
    phi_x1 = phi(x2).reshape(B, Ci, -1)
    e1 = jnp.matmul(theta_x2, phi_x1)
    e2 = jnp.transpose(e1, (0, 2, 1))
    e2s = jax.nn.softmax(e1, axis=-2)
    e1s = jax.nn.softmax(e2, axis=-2)
    y1 = jnp.matmul(g_x11, e2s).reshape(B, Ci, H, Wd)
    y2 = jnp.matmul(g_x21, e1s).reshape(B, Ci, H, Wd)
    return x1 + Wmod(y1), x2 + Wmod(y2)


if __name__ == "__main__":
    B, C, H, W = 2, 4, 16, 16          # inter_channels Ci = C // 2 = 2, N = 256
    Ci = max(C // 2, 1)

    key = jax.random.PRNGKey(0)
    k_x1, k_x2, k_p = jax.random.split(key, 3)
    x1 = jax.random.normal(k_x1, (B, C, H, W), jnp.float32)
    x2 = jax.random.normal(k_x2, (B, C, H, W), jnp.float32)

    params = init_params(k_p, C, Ci)
    folded = fold_params(params)

    # tile_q=128 -> 2 spatial tiles, exercising the flash-accumulation path.
    o1, o2 = spatiotemporal_attention(x1, x2, folded, tile_q=128)
    jax.block_until_ready((o1, o2))

    r1, r2 = reference(x1, x2, params)
    # bf16 MXU operands + bf16 outputs -> loosened tolerance vs. the f32 reference.
    np.testing.assert_allclose(np.asarray(o1.astype(jnp.float32)), np.asarray(r1),
                               rtol=2e-2, atol=2e-2)
    np.testing.assert_allclose(np.asarray(o2.astype(jnp.float32)), np.asarray(r2),
                               rtol=2e-2, atol=2e-2)

    print("KERNEL_OK")
</pallas_src>

<mosaic_0001>
module attributes {stable_mosaic.version = 11 : i64} {
  func.func @st_attn_kernel(%arg0: i32, %arg1: i32, %arg2: memref<1x4x256xf32, #tpu.memory_space<vmem>>, %arg3: memref<1x4x256xf32, #tpu.memory_space<vmem>>, %arg4: memref<8x4xf32, #tpu.memory_space<vmem>>, %arg5: memref<8x1xf32, #tpu.memory_space<vmem>>, %arg6: memref<8x4xf32, #tpu.memory_space<vmem>>, %arg7: memref<8x1xf32, #tpu.memory_space<vmem>>, %arg8: memref<4x1xf32, #tpu.memory_space<vmem>>, %arg9: memref<1x4x256xbf16, #tpu.memory_space<vmem>>, %arg10: memref<1x4x128xbf16, #tpu.memory_space<vmem>>, %arg11: memref<8x256xbf16, #tpu.memory_space<vmem>>, %arg12: memref<1x1xf32, #tpu.memory_space<vmem>>, %arg13: memref<6x256xf32, #tpu.memory_space<vmem>>) attributes {dimension_semantics = [#tpu.dimension_semantics<parallel>, #tpu.dimension_semantics<arbitrary>], iteration_bounds = array<i64: 2, 2>, scalar_prefetch = 0 : i64, scratch_operands = 3 : i64, tpu.core_type = #tpu.core_type<tc>, window_params = [{transform_indices = @transform_0, window_bounds = array<i64: 1, 4, 256>}, {transform_indices = @transform_1, window_bounds = array<i64: 1, 4, 256>}, {pipeline_mode = #tpu.pipeline_mode<synchronous>, transform_indices = @transform_2, window_bounds = array<i64: 8, 4>}, {pipeline_mode = #tpu.pipeline_mode<synchronous>, transform_indices = @transform_3, window_bounds = array<i64: 8, 1>}, {pipeline_mode = #tpu.pipeline_mode<synchronous>, transform_indices = @transform_4, window_bounds = array<i64: 8, 4>}, {pipeline_mode = #tpu.pipeline_mode<synchronous>, transform_indices = @transform_5, window_bounds = array<i64: 8, 1>}, {pipeline_mode = #tpu.pipeline_mode<synchronous>, transform_indices = @transform_6, window_bounds = array<i64: 4, 1>}, {transform_indices = @transform_7, window_bounds = array<i64: 1, 4, 256>}, {transform_indices = @transform_8, window_bounds = array<i64: 1, 4, 128>}]} {
    %c0_i32 = arith.constant 0 : i32
    %0 = arith.cmpi eq, %arg1, %c0_i32 : i32
    %1 = arith.extui %0 : i1 to i32
    %c0_i32_0 = arith.constant 0 : i32
    %2 = arith.cmpi ne, %1, %c0_i32_0 : i32
    scf.if %2 {
      %c0_31 = arith.constant 0 : index
      %c0_32 = arith.constant 0 : index
      %60 = vector.load %arg6[%c0_31, %c0_32] : memref<8x4xf32, #tpu.memory_space<vmem>>, vector<8x4xf32>
      %c0_33 = arith.constant 0 : index
      %c0_34 = arith.constant 0 : index
      %c0_35 = arith.constant 0 : index
      %61 = vector.load %arg3[%c0_33, %c0_34, %c0_35] : memref<1x4x256xf32, #tpu.memory_space<vmem>>, vector<1x4x256xf32>
      %62 = vector.shape_cast %61 : vector<1x4x256xf32> to vector<4x256xf32>
      %cst_36 = arith.constant dense<0.000000e+00> : vector<8x256xf32>
      %63 = tpu.matmul %60, %62, %cst_36 {dimension_numbers = #tpu.dot_dimension_numbers<[1], [0], [0], [1], [0, 0, 1, 1], [], []>} : vector<8x4xf32>, vector<4x256xf32>, vector<8x256xf32> -> vector<8x256xf32>
      %c0_37 = arith.constant 0 : index
      %c0_38 = arith.constant 0 : index
      %64 = vector.load %arg7[%c0_37, %c0_38] : memref<8x1xf32, #tpu.memory_space<vmem>>, vector<8x1xf32>
      %65 = vector.broadcast %64 : vector<8x1xf32> to vector<8x256xf32>
      %66 = arith.addf %63, %65 : vector<8x256xf32>
      %67 = arith.truncf %66 : vector<8x256xf32> to vector<8x256xbf16>
      %c0_39 = arith.constant 0 : index
      %c0_40 = arith.constant 0 : index
      %68 = vector.load %arg11[%c0_39, %c0_40] : memref<8x256xbf16, #tpu.memory_space<vmem>>, vector<8x256xbf16>
      tpu.vector_store %arg11[%c0_39, %c0_40], %67 {strides = array<i32>} : memref<8x256xbf16, #tpu.memory_space<vmem>>, vector<8x256xbf16>,
      %cst_41 = arith.constant 0xFF800000 : f32
      %69 = vector.broadcast %cst_41 : f32 to vector<1x1xf32>
      %c0_42 = arith.constant 0 : index
      %c0_43 = arith.constant 0 : index
      %70 = vector.load %arg12[%c0_42, %c0_43] : memref<1x1xf32, #tpu.memory_space<vmem>>, vector<1x1xf32>
      tpu.vector_store %arg12[%c0_42, %c0_43], %69 {strides = array<i32>} : memref<1x1xf32, #tpu.memory_space<vmem>>, vector<1x1xf32>,
      %cst_44 = arith.constant 0.000000e+00 : f32
      %71 = vector.broadcast %cst_44 : f32 to vector<6x256xf32>
      %c0_45 = arith.constant 0 : index
      %c0_46 = arith.constant 0 : index
      %72 = vector.load %arg13[%c0_45, %c0_46] : memref<6x256xf32, #tpu.memory_space<vmem>>, vector<6x256xf32>
      tpu.vector_store %arg13[%c0_45, %c0_46], %71 {strides = array<i32>} : memref<6x256xf32, #tpu.memory_space<vmem>>, vector<6x256xf32>,
    } else {
    }
    %c128_i32 = arith.constant 128 : i32
    %3 = arith.muli %arg1, %c128_i32 : i32
    %4 = tpu.assume_multiple %3, 128 : i32
    %c0 = arith.constant 0 : index
    %c0_1 = arith.constant 0 : index
    %5 = arith.index_cast %4 : i32 to index
    %6 = vector.load %arg2[%c0, %c0_1, %5] : memref<1x4x256xf32, #tpu.memory_space<vmem>>, vector<1x4x128xf32>
    %7 = vector.shape_cast %6 : vector<1x4x128xf32> to vector<4x128xf32>
    %c0_2 = arith.constant 0 : index
    %c0_3 = arith.constant 0 : index
    %8 = vector.load %arg4[%c0_2, %c0_3] : memref<8x4xf32, #tpu.memory_space<vmem>>, vector<8x4xf32>
    %cst = arith.constant dense<0.000000e+00> : vector<8x128xf32>
    %9 = tpu.matmul %8, %7, %cst {dimension_numbers = #tpu.dot_dimension_numbers<[1], [0], [0], [1], [0, 0, 1, 1], [], []>} : vector<8x4xf32>, vector<4x128xf32>, vector<8x128xf32> -> vector<8x128xf32>
    %c0_4 = arith.constant 0 : index
    %c0_5 = arith.constant 0 : index
    %10 = vector.load %arg5[%c0_4, %c0_5] : memref<8x1xf32, #tpu.memory_space<vmem>>, vector<8x1xf32>
    %11 = vector.broadcast %10 : vector<8x1xf32> to vector<8x128xf32>
    %12 = arith.addf %9, %11 : vector<8x128xf32>
    %13 = vector.extract_strided_slice %12 {offsets = [0, 0], sizes = [2, 128], strides = [1, 1]} : vector<8x128xf32> to vector<2x128xf32>
    %14 = arith.truncf %13 : vector<2x128xf32> to vector<2x128xbf16>
    %15 = vector.extract_strided_slice %12 {offsets = [2, 0], sizes = [6, 128], strides = [1, 1]} : vector<8x128xf32> to vector<6x128xf32>
    %16 = arith.truncf %15 : vector<6x128xf32> to vector<6x128xbf16>
    %c0_6 = arith.constant 0 : index
    %c0_7 = arith.constant 0 : index
    %17 = vector.load %arg11[%c0_6, %c0_7] : memref<8x256xbf16, #tpu.memory_space<vmem>>, vector<2x256xbf16>
    %cst_8 = arith.constant dense<0.000000e+00> : vector<128x256xf32>
    %18 = tpu.matmul %14, %17, %cst_8 {dimension_numbers = #tpu.dot_dimension_numbers<[0], [0], [1], [1], [0, 1, 1, 1], [], []>} : vector<2x128xbf16>, vector<2x256xbf16>, vector<128x256xf32> -> vector<128x256xf32>
    %c0_9 = arith.constant 0 : index
    %c0_10 = arith.constant 0 : index
    %19 = vector.load %arg12[%c0_9, %c0_10] : memref<1x1xf32, #tpu.memory_space<vmem>>, vector<1x1xf32>
    %cst_11 = arith.constant dense<0xFF800000> : vector<128xf32>
    %20 = vector.multi_reduction <maximumf>, %18, %cst_11 [1] : vector<128x256xf32> to vector<128xf32>
    %21 = vector.shape_cast %20 : vector<128xf32> to vector<128x1xf32>
    %cst_12 = arith.constant dense<0xFF800000> : vector<1xf32>
    %22 = vector.multi_reduction <maximumf>, %21, %cst_12 [0] : vector<128x1xf32> to vector<1xf32>
    %23 = vector.shape_cast %22 : vector<1xf32> to vector<1x1xf32>
    %24 = arith.maximumf %19, %23 : vector<1x1xf32>
    %25 = vector.broadcast %24 : vector<1x1xf32> to vector<128x256xf32>
    %26 = arith.subf %18, %25 : vector<128x256xf32>
    %27 = math.exp %26 : vector<128x256xf32>
    %28 = arith.truncf %27 : vector<128x256xf32> to vector<128x256xbf16>
    %c2 = arith.constant 2 : index
    %c0_13 = arith.constant 0 : index
    %29 = vector.load %arg11[%c2, %c0_13] : memref<8x256xbf16, #tpu.memory_space<vmem>>, vector<6x256xbf16>
    %cst_14 = arith.constant dense<0.000000e+00> : vector<6x128xf32>
    %30 = tpu.matmul %29, %28, %cst_14 {dimension_numbers = #tpu.dot_dimension_numbers<[1], [1], [0], [0], [0, 0, 1, 0], [], []>} : vector<6x256xbf16>, vector<128x256xbf16>, vector<6x128xf32> -> vector<6x128xf32>
    %31 = vector.extract_strided_slice %30 {offsets = [4, 0], sizes = [1, 128], strides = [1, 1]} : vector<6x128xf32> to vector<1x128xf32>
    %cst_15 = arith.constant 1.000000e+00 : f32
    %32 = vector.broadcast %cst_15 : f32 to vector<1x128xf32>
    %33 = arith.divf %32, %31 : vector<1x128xf32>
    %c0_16 = arith.constant 0 : index
    %c0_17 = arith.constant 0 : index
    %34 = arith.index_cast %4 : i32 to index
    %35 = vector.load %arg3[%c0_16, %c0_17, %34] : memref<1x4x256xf32, #tpu.memory_space<vmem>>, vector<1x4x128xf32>
    %36 = vector.shape_cast %35 : vector<1x4x128xf32> to vector<4x128xf32>
    %37 = vector.extract_strided_slice %30 {offsets = [0, 0], sizes = [4, 128], strides = [1, 1]} : vector<6x128xf32> to vector<4x128xf32>
    %38 = vector.broadcast %33 : vector<1x128xf32> to vector<4x128xf32>
    %39 = arith.mulf %37, %38 : vector<4x128xf32>
    %40 = arith.addf %36, %39 : vector<4x128xf32>
    %c0_18 = arith.constant 0 : index
    %c0_19 = arith.constant 0 : index
    %41 = vector.load %arg8[%c0_18, %c0_19] : memref<4x1xf32, #tpu.memory_space<vmem>>, vector<4x1xf32>
    %42 = vector.broadcast %41 : vector<4x1xf32> to vector<4x128xf32>
    %43 = arith.addf %40, %42 : vector<4x128xf32>
    %44 = arith.truncf %43 : vector<4x128xf32> to vector<4x128xbf16>
    %c0_20 = arith.constant 0 : index
    %c0_21 = arith.constant 0 : index
    %c0_22 = arith.constant 0 : index
    %45 = vector.load %arg10[%c0_20, %c0_21, %c0_22] : memref<1x4x128xbf16, #tpu.memory_space<vmem>>, vector<1x4x128xbf16>
    %46 = vector.shape_cast %45 : vector<1x4x128xbf16> to vector<4x128xbf16>
    %47 = vector.shape_cast %44 : vector<4x128xbf16> to vector<1x4x128xbf16>
    tpu.vector_store %arg10[%c0_20, %c0_21, %c0_22], %47 {strides = array<i32>} : memref<1x4x128xbf16, #tpu.memory_space<vmem>>, vector<1x4x128xbf16>,
    %48 = arith.subf %19, %24 : vector<1x1xf32>
    %49 = math.exp %48 : vector<1x1xf32>
    %c0_23 = arith.constant 0 : index
    %c0_24 = arith.constant 0 : index
    %50 = vector.load %arg13[%c0_23, %c0_24] : memref<6x256xf32, #tpu.memory_space<vmem>>, vector<6x256xf32>
    %51 = vector.broadcast %49 : vector<1x1xf32> to vector<6x256xf32>
    %52 = arith.mulf %50, %51 : vector<6x256xf32>
    %cst_25 = arith.constant dense<0.000000e+00> : vector<6x256xf32>
    %53 = tpu.matmul %16, %28, %cst_25 {dimension_numbers = #tpu.dot_dimension_numbers<[1], [0], [0], [1], [0, 0, 1, 1], [], []>} : vector<6x128xbf16>, vector<128x256xbf16>, vector<6x256xf32> -> vector<6x256xf32>
    %54 = arith.addf %52, %53 : vector<6x256xf32>
    %c0_26 = arith.constant 0 : index
    %c0_27 = arith.constant 0 : index
    %55 = vector.load %arg13[%c0_26, %c0_27] : memref<6x256xf32, #tpu.memory_space<vmem>>, vector<6x256xf32>
    tpu.vector_store %arg13[%c0_26, %c0_27], %54 {strides = array<i32>} : memref<6x256xf32, #tpu.memory_space<vmem>>, vector<6x256xf32>,
    %c0_28 = arith.constant 0 : index
    %c0_29 = arith.constant 0 : index
    %56 = vector.load %arg12[%c0_28, %c0_29] : memref<1x1xf32, #tpu.memory_space<vmem>>, vector<1x1xf32>
    tpu.vector_store %arg12[%c0_28, %c0_29], %24 {strides = array<i32>} : memref<1x1xf32, #tpu.memory_space<vmem>>, vector<1x1xf32>,
    %c1_i32 = arith.constant 1 : i32
    %57 = arith.cmpi eq, %arg1, %c1_i32 : i32
    %58 = arith.extui %57 : i1 to i32
    %c0_i32_30 = arith.constant 0 : i32
    %59 = arith.cmpi ne, %58, %c0_i32_30 : i32
    scf.if %59 {
      %c4 = arith.constant 4 : index
      %c0_31 = arith.constant 0 : index
      %60 = vector.load %arg13[%c4, %c0_31] : memref<6x256xf32, #tpu.memory_space<vmem>>, vector<1x256xf32>
      %cst_32 = arith.constant 1.000000e+00 : f32
      %61 = vector.broadcast %cst_32 : f32 to vector<1x256xf32>
      %62 = arith.divf %61, %60 : vector<1x256xf32>
      %c0_33 = arith.constant 0 : index
      %c0_34 = arith.constant 0 : index
      %c0_35 = arith.constant 0 : index
      %63 = vector.load %arg2[%c0_33, %c0_34, %c0_35] : memref<1x4x256xf32, #tpu.memory_space<vmem>>, vector<1x4x256xf32>
      %64 = vector.shape_cast %63 : vector<1x4x256xf32> to vector<4x256xf32>
      %c0_36 = arith.constant 0 : index
      %c0_37 = arith.constant 0 : index
      %65 = vector.load %arg13[%c0_36, %c0_37] : memref<6x256xf32, #tpu.memory_space<vmem>>, vector<4x256xf32>
      %66 = vector.broadcast %62 : vector<1x256xf32> to vector<4x256xf32>
      %67 = arith.mulf %65, %66 : vector<4x256xf32>
      %68 = arith.addf %64, %67 : vector<4x256xf32>
      %c0_38 = arith.constant 0 : index
      %c0_39 = arith.constant 0 : index
      %69 = vector.load %arg8[%c0_38, %c0_39] : memref<4x1xf32, #tpu.memory_space<vmem>>, vector<4x1xf32>
      %70 = vector.broadcast %69 : vector<4x1xf32> to vector<4x256xf32>
      %71 = arith.addf %68, %70 : vector<4x256xf32>
      %72 = arith.truncf %71 : vector<4x256xf32> to vector<4x256xbf16>
      %c0_40 = arith.constant 0 : index
      %c0_41 = arith.constant 0 : index
      %c0_42 = arith.constant 0 : index
      %73 = vector.load %arg9[%c0_40, %c0_41, %c0_42] : memref<1x4x256xbf16, #tpu.memory_space<vmem>>, vector<1x4x256xbf16>
      %74 = vector.shape_cast %73 : vector<1x4x256xbf16> to vector<4x256xbf16>
      %75 = vector.shape_cast %72 : vector<4x256xbf16> to vector<1x4x256xbf16>
      tpu.vector_store %arg9[%c0_40, %c0_41, %c0_42], %75 {strides = array<i32>} : memref<1x4x256xbf16, #tpu.memory_space<vmem>>, vector<1x4x256xbf16>,
    } else {
    }
    return
  }
  func.func @transform_0(%arg0: i32, %arg1: i32) -> (i32, i32, i32) {
    %c0_i32 = arith.constant 0 : i32
    %c0_i32_0 = arith.constant 0 : i32
    %c0_i32_1 = arith.constant 0 : i32
    return %arg0, %c0_i32, %c0_i32_0 : i32, i32, i32
  }
  func.func @transform_1(%arg0: i32, %arg1: i32) -> (i32, i32, i32) {
    %c0_i32 = arith.constant 0 : i32
    %c0_i32_0 = arith.constant 0 : i32
    %c0_i32_1 = arith.constant 0 : i32
    return %arg0, %c0_i32, %c0_i32_0 : i32, i32, i32
  }
  func.func @transform_2(%arg0: i32, %arg1: i32) -> (i32, i32) {
    %c0_i32 = arith.constant 0 : i32
    %c0_i32_0 = arith.constant 0 : i32
    %c0_i32_1 = arith.constant 0 : i32
    return %c0_i32, %c0_i32_0 : i32, i32
  }
  func.func @transform_3(%arg0: i32, %arg1: i32) -> (i32, i32) {
    %c0_i32 = arith.constant 0 : i32
    %c0_i32_0 = arith.constant 0 : i32
    %c0_i32_1 = arith.constant 0 : i32
    return %c0_i32, %c0_i32_0 : i32, i32
  }
  func.func @transform_4(%arg0: i32, %arg1: i32) -> (i32, i32) {
    %c0_i32 = arith.constant 0 : i32
    %c0_i32_0 = arith.constant 0 : i32
    %c0_i32_1 = arith.constant 0 : i32
    return %c0_i32, %c0_i32_0 : i32, i32
  }
  func.func @transform_5(%arg0: i32, %arg1: i32) -> (i32, i32) {
    %c0_i32 = arith.constant 0 : i32
    %c0_i32_0 = arith.constant 0 : i32
    %c0_i32_1 = arith.constant 0 : i32
    return %c0_i32, %c0_i32_0 : i32, i32
  }
  func.func @transform_6(%arg0: i32, %arg1: i32) -> (i32, i32) {
    %c0_i32 = arith.constant 0 : i32
    %c0_i32_0 = arith.constant 0 : i32
    %c0_i32_1 = arith.constant 0 : i32
    return %c0_i32, %c0_i32_0 : i32, i32
  }
  func.func @transform_7(%arg0: i32, %arg1: i32) -> (i32, i32, i32) {
    %c0_i32 = arith.constant 0 : i32
    %c0_i32_0 = arith.constant 0 : i32
    %c0_i32_1 = arith.constant 0 : i32
    return %arg0, %c0_i32, %c0_i32_0 : i32, i32, i32
  }
  func.func @transform_8(%arg0: i32, %arg1: i32) -> (i32, i32, i32) {
    %c0_i32 = arith.constant 0 : i32
    %c0_i32_0 = arith.constant 0 : i32
    return %arg0, %c0_i32, %arg1 : i32, i32, i32
  }
}

</mosaic_0001>

<llo_original>
// kernel: tpu_custom_call.1
$region0: #{tpu_custom_call.1}
  #allocation0 [shape = 'u32[]', space=smem, size = 0x4, offset = 0x4, fixed_abs, tag = 'smem constant byte address 0x4 - core index']
  #allocation1 [shape = 'u32[144,128]{1,0:T(1,128)}', space=vmem, size = 0x12000, scoped, tag = 'internal scratch']
  #allocation2 [shape = 'bf16[8,256]{1,0:T(8,128)(2,1)}', space=vmem, size = 0x1000, scoped, tag = 'scratch operand']
  #allocation3 [shape = 'f32[1,1]{1,0:T(1,128)}', space=vmem, size = 0x200, scoped, tag = 'scratch operand']
  #allocation4 [shape = 'f32[6,256]{1,0:T(8,128)}', space=vmem, size = 0x2000, scoped, tag = 'scratch operand']
  %s0 = inlined_call_operand.vmem [shape: f32[2,4,256], index: 0, kind: input, shape index: {}]
  %s1 = inlined_call_operand.vmem [shape: f32[2,4,256], index: 1, kind: input, shape index: {}]
  %s2 = inlined_call_operand.vmem [shape: f32[8,4], index: 2, kind: input, shape index: {}]
  %s3 = inlined_call_operand.vmem [shape: f32[8,1], index: 3, kind: input, shape index: {}]
  %s4 = inlined_call_operand.vmem [shape: f32[8,4], index: 4, kind: input, shape index: {}]
  %s5 = inlined_call_operand.vmem [shape: f32[8,1], index: 5, kind: input, shape index: {}]
  %s6 = inlined_call_operand.vmem [shape: f32[4,1], index: 6, kind: input, shape index: {}]
  %s7 = inlined_call_operand.hbm [shape: bf16[2,4,256], index: 7, kind: output, shape index: {0}]
  %s8 = inlined_call_operand.hbm [shape: bf16[2,4,256], index: 8, kind: output, shape index: {1}]
  %9 = xla_tuple %s7, %s8
  %s10 = sld [smem:[#allocation0]]
  $region77: #{tpu_custom_call.1} parent=0
    _
  %s12 = ssub.s32 1, %s10
  %s13 = scalar_select 0, %s12, %s10
  $region1: #{tpu_custom_call.1} parent=0
    #allocation5 [shape = 'u8[4096]{0}', space=vmem, size = 0x1000, scoped, tag = 'output window, operand 0']
    #allocation6 [shape = 's32[2]{0}', space=sflag, size = 0x8, scoped, tag = 'scoped memory for tpu_custom_call.1']
    #allocation7 [shape = 'u8[2048]{0}', space=vmem, size = 0x800, scoped, tag = 'output window, operand 1']
    #allocation8 [shape = 's32[2]{0}', space=sflag, size = 0x8, scoped, tag = 'scoped memory for tpu_custom_call.1']
    %14 = vsyncpa [#allocation6], 0
    %s15 = scalar_lea.sflag [#allocation6], 1
    %16 = vsyncpa %s15, 0
    %17 = vsyncpa [#allocation8], 0
    %s18 = scalar_lea.sflag [#allocation8], 1
    %19 = vsyncpa %s18, 0
    loop: start=0, step=1, limit=6
    $region2: #{tpu_custom_call.1} parent=1 // loop_pre_header
      _
    $region3: #{tpu_custom_call.1} parent=1 // loop_header
      %s21 = sphi 0, %s25
      %p22 = scmp.ge.s32.totalorder %s21, 6
      %s28 = sphi 0, %s40
      %s29 = sphi 0, %s36
      %s30 = sphi 0, %s28
      %s31 = sphi 0, %s29
      %s32 = sphi 0, %s30
      %s33 = sphi 0, %s31
      %s43 = sphi 0, %s45
      %s46 = sphi 0, %s43
      %s47 = sphi 0, %s46
      %s63 = sphi 0, %s47
      %s69 = sphi 0, %s71
      %s72 = sphi 0, %s69
      %s73 = sphi 0, %s72
      %s89 = sphi 0, %s73
      %s93 = sphi 0, %s93
      %s95 = sphi 0, %s93
      %s96 = sphi 0, %s95
      %s110 = sphi 0, %s96
      %s114 = sphi 0, %s114
      %s116 = sphi 0, %s114
      %s117 = sphi 0, %s116
      %s131 = sphi 0, %s117
      %s135 = sphi 0, %s135
      %s137 = sphi 0, %s135
      %s138 = sphi 0, %s137
      %s152 = sphi 0, %s138
      %s156 = sphi 0, %s156
      %s158 = sphi 0, %s156
      %s159 = sphi 0, %s158
      %s173 = sphi 0, %s159
      %s177 = sphi 0, %s177
      %s179 = sphi 0, %s177
      %s180 = sphi 0, %s179
      %s194 = sphi 0, %s180
      %s200 = sphi 0, %s202
      %s203 = sphi 0, %s200
      %s204 = sphi 0, %s203
      %s220 = sphi 0, %s204
      %s228 = sphi 0, %s230
      %s231 = sphi 0, %s228
      %s232 = sphi 0, %s231
      %s248 = sphi 0, %s232
    $region4: #{tpu_custom_call.1} parent=1 // loop_header_branch
      %24 = sbr.rel (%p22) target = $region8
    $region5: #{tpu_custom_call.1} parent=1 // loop_body
      %s26 = ssub.s32 %s21, 1
      %s27 = ssub.s32 %s21, 2
      %s34 = sadd.s32 1, %s29
      %p35 = scmp.ge.s32.totalorder %s34, 2
      %s36 = scalar_select %p35, 0, %s34
      %s37 = sadd.s32 1, %s28
      %s38 = scalar_select %p35, %s37, %s28
      %p39 = scmp.ge.s32.totalorder %s38, 2
      %s40 = scalar_select %p39, 0, %s38
      %s41 = ssub.s32 %s28, %s40
      %p42 = scmp.eq.s32.totalorder %s41, 0
      %s44 = sadd.s32 %s43, 1
      %s45 = scalar_select %p42, %s43, %s44
      %p48 = pneg %p42
      %p49 = scmp.eq.s32.totalorder %s21, 3
      %p50 = por %p48, %p49
      %p51 = scmp.ne.s32.totalorder %s43, %s46
      %p52 = scmp.eq.s32.totalorder %s21, 0
      %p53 = por %p51, %p52
      %p54 = scmp.ne.s32.totalorder %s43, %s46
      %p55 = scmp.eq.s32.totalorder %s26, 3
      %p56 = por %p54, %p55
      %p57 = scmp.ne.s32.totalorder %s46, %s47
      %p58 = scmp.eq.s32.totalorder %s26, 0
      %p59 = por %p57, %p58
      %p60 = scmp.ne.s32.totalorder %s46, %s47
      %p61 = scmp.eq.s32.totalorder %s27, 3
      %p62 = por %p60, %p61
      %p64 = scmp.ne.s32.totalorder %s47, %s63
      %p65 = scmp.eq.s32.totalorder %s27, 0
      %p66 = por %p64, %p65
      %s67 = ssub.s32 %s28, %s40
      %p68 = scmp.eq.s32.totalorder %s67, 0
      %s70 = sadd.s32 %s69, 1
      %s71 = scalar_select %p68, %s69, %s70
      %p74 = pneg %p68
      %p75 = scmp.eq.s32.totalorder %s21, 3
      %p76 = por %p74, %p75
      %p77 = scmp.ne.s32.totalorder %s69, %s72
      %p78 = scmp.eq.s32.totalorder %s21, 0
      %p79 = por %p77, %p78
      %p80 = scmp.ne.s32.totalorder %s69, %s72
      %p81 = scmp.eq.s32.totalorder %s26, 3
      %p82 = por %p80, %p81
      %p83 = scmp.ne.s32.totalorder %s72, %s73
      %p84 = scmp.eq.s32.totalorder %s26, 0
      %p85 = por %p83, %p84
      %p86 = scmp.ne.s32.totalorder %s72, %s73
      %p87 = scmp.eq.s32.totalorder %s27, 3
      %p88 = por %p86, %p87
      %p90 = scmp.ne.s32.totalorder %s73, %s89
      %p91 = scmp.eq.s32.totalorder %s27, 0
      %p92 = por %p90, %p91
      %s94 = sadd.s32 %s93, 1
      %p97 = scmp.eq.s32.totalorder %s21, 3
      %p98 = scmp.ne.s32.totalorder %s93, %s95
      %p99 = scmp.eq.s32.totalorder %s21, 0
      %p100 = por %p98, %p99
      %p101 = scmp.ne.s32.totalorder %s93, %s95
      %p102 = scmp.eq.s32.totalorder %s26, 3
      %p103 = por %p101, %p102
      %p104 = scmp.ne.s32.totalorder %s95, %s96
      %p105 = scmp.eq.s32.totalorder %s26, 0
      %p106 = por %p104, %p105
      %p107 = scmp.ne.s32.totalorder %s95, %s96
      %p108 = scmp.eq.s32.totalorder %s27, 3
      %p109 = por %p107, %p108
      %p111 = scmp.ne.s32.totalorder %s96, %s110
      %p112 = scmp.eq.s32.totalorder %s27, 0
      %p113 = por %p111, %p112
      %s115 = sadd.s32 %s114, 1
      %p118 = scmp.eq.s32.totalorder %s21, 3
      %p119 = scmp.ne.s32.totalorder %s114, %s116
      %p120 = scmp.eq.s32.totalorder %s21, 0
      %p121 = por %p119, %p120
      %p122 = scmp.ne.s32.totalorder %s114, %s116
      %p123 = scmp.eq.s32.totalorder %s26, 3
      %p124 = por %p122, %p123
      %p125 = scmp.ne.s32.totalorder %s116, %s117
      %p126 = scmp.eq.s32.totalorder %s26, 0
      %p127 = por %p125, %p126
      %p128 = scmp.ne.s32.totalorder %s116, %s117
      %p129 = scmp.eq.s32.totalorder %s27, 3
      %p130 = por %p128, %p129
      %p132 = scmp.ne.s32.totalorder %s117, %s131
      %p133 = scmp.eq.s32.totalorder %s27, 0
      %p134 = por %p132, %p133
      %s136 = sadd.s32 %s135, 1
      %p139 = scmp.eq.s32.totalorder %s21, 3
      %p140 = scmp.ne.s32.totalorder %s135, %s137
      %p141 = scmp.eq.s32.totalorder %s21, 0
      %p142 = por %p140, %p141
      %p143 = scmp.ne.s32.totalorder %s135, %s137
      %p144 = scmp.eq.s32.totalorder %s26, 3
      %p145 = por %p143, %p144
      %p146 = scmp.ne.s32.totalorder %s137, %s138
      %p147 = scmp.eq.s32.totalorder %s26, 0
      %p148 = por %p146, %p147
      %p149 = scmp.ne.s32.totalorder %s137, %s138
      %p150 = scmp.eq.s32.totalorder %s27, 3
      %p151 = por %p149, %p150
      %p153 = scmp.ne.s32.totalorder %s138, %s152
      %p154 = scmp.eq.s32.totalorder %s27, 0
      %p155 = por %p153, %p154
      %s157 = sadd.s32 %s156, 1
      %p160 = scmp.eq.s32.totalorder %s21, 3
      %p161 = scmp.ne.s32.totalorder %s156, %s158
      %p162 = scmp.eq.s32.totalorder %s21, 0
      %p163 = por %p161, %p162
      %p164 = scmp.ne.s32.totalorder %s156, %s158
      %p165 = scmp.eq.s32.totalorder %s26, 3
      %p166 = por %p164, %p165
      %p167 = scmp.ne.s32.totalorder %s158, %s159
      %p168 = scmp.eq.s32.totalorder %s26, 0
      %p169 = por %p167, %p168
      %p170 = scmp.ne.s32.totalorder %s158, %s159
      %p171 = scmp.eq.s32.totalorder %s27, 3
      %p172 = por %p170, %p171
      %p174 = scmp.ne.s32.totalorder %s159, %s173
      %p175 = scmp.eq.s32.totalorder %s27, 0
      %p176 = por %p174, %p175
      %s178 = sadd.s32 %s177, 1
      %p181 = scmp.eq.s32.totalorder %s21, 3
      %p182 = scmp.ne.s32.totalorder %s177, %s179
      %p183 = scmp.eq.s32.totalorder %s21, 0
      %p184 = por %p182, %p183
      %p185 = scmp.ne.s32.totalorder %s177, %s179
      %p186 = scmp.eq.s32.totalorder %s26, 3
      %p187 = por %p185, %p186
      %p188 = scmp.ne.s32.totalorder %s179, %s180
      %p189 = scmp.eq.s32.totalorder %s26, 0
      %p190 = por %p188, %p189
      %p191 = scmp.ne.s32.totalorder %s179, %s180
      %p192 = scmp.eq.s32.totalorder %s27, 3
      %p193 = por %p191, %p192
      %p195 = scmp.ne.s32.totalorder %s180, %s194
      %p196 = scmp.eq.s32.totalorder %s27, 0
      %p197 = por %p195, %p196
      %s198 = ssub.s32 %s28, %s40
      %p199 = scmp.eq.s32.totalorder %s198, 0
      %s201 = sadd.s32 %s200, 1
      %s202 = scalar_select %p199, %s200, %s201
      %p205 = pneg %p199
      %p206 = scmp.eq.s32.totalorder %s21, 3
      %p207 = por %p205, %p206
      %p208 = scmp.ne.s32.totalorder %s200, %s203
      %p209 = scmp.eq.s32.totalorder %s21, 0
      %p210 = por %p208, %p209
      %p211 = scmp.ne.s32.totalorder %s200, %s203
      %p212 = scmp.eq.s32.totalorder %s26, 3
      %p213 = por %p211, %p212
      %p214 = scmp.ne.s32.totalorder %s203, %s204
      %p215 = scmp.eq.s32.totalorder %s26, 0
      %p216 = por %p214, %p215
      %p217 = scmp.ne.s32.totalorder %s203, %s204
      %p218 = scmp.eq.s32.totalorder %s27, 3
      %p219 = por %p217, %p218
      %p221 = scmp.ne.s32.totalorder %s204, %s220
      %p222 = scmp.eq.s32.totalorder %s27, 0
      %p223 = por %p221, %p222
      %s224 = ssub.s32 %s28, %s40
      %s225 = ssub.s32 %s29, %s36
      %s226 = sor.u32 %s224, %s225
      %p227 = scmp.eq.s32.totalorder %s226, 0
      %s229 = sadd.s32 %s228, 1
      %s230 = scalar_select %p227, %s228, %s229
      %p233 = pneg %p227
      %p234 = scmp.eq.s32.totalorder %s21, 3
      %p235 = por %p233, %p234
      %p236 = scmp.ne.s32.totalorder %s228, %s231
      %p237 = scmp.eq.s32.totalorder %s21, 0
      %p238 = por %p236, %p237
      %p239 = scmp.ne.s32.totalorder %s228, %s231
      %p240 = scmp.eq.s32.totalorder %s26, 3
      %p241 = por %p239, %p240
      %p242 = scmp.ne.s32.totalorder %s231, %s232
      %p243 = scmp.eq.s32.totalorder %s26, 0
      %p244 = por %p242, %p243
      %p245 = scmp.ne.s32.totalorder %s231, %s232
      %p246 = scmp.eq.s32.totalorder %s27, 3
      %p247 = por %p245, %p246
      %p249 = scmp.ne.s32.totalorder %s232, %s248
      %p250 = scmp.eq.s32.totalorder %s27, 0
      %p251 = por %p249, %p250
      %p252 = scmp.le.s32.totalorder 1, %s21
      %p253 = scmp.lt.s32.totalorder %s21, 5
      %p254 = pnand %p252, %p253
      %p255 = pneg %p254
      // Predicated region
      $region9: #{tpu_custom_call.1} parent=5 // pred_check
        _
      $region10: #{tpu_custom_call.1} parent=5 // pred_check_branch
        %257 = sbr.rel (%p254) target = $region12
      $region11: #{tpu_custom_call.1} parent=5 // pred_region
        %s258 = ssub.s32 %s21, 1
        // Predicated region
        $region13: #{tpu_custom_call.1} parent=11 // pred_check
          %p259 = pneg %p106
        $region14: #{tpu_custom_call.1} parent=11 // pred_check_branch
          %261 = sbr.rel (%p259) target = $region16
        $region15: #{tpu_custom_call.1} parent=11 // pred_region
          _
        $region16: #{tpu_custom_call.1} parent=11 // pred_fallthru
          _
        // Predicated region
        $region17: #{tpu_custom_call.1} parent=11 // pred_check
          %p262 = pneg %p127
        $region18: #{tpu_custom_call.1} parent=11 // pred_check_branch
          %264 = sbr.rel (%p262) target = $region20
        $region19: #{tpu_custom_call.1} parent=11 // pred_region
          _
        $region20: #{tpu_custom_call.1} parent=11 // pred_fallthru
          _
        // Predicated region
        $region21: #{tpu_custom_call.1} parent=11 // pred_check
          %p265 = pneg %p148
        $region22: #{tpu_custom_call.1} parent=11 // pred_check_branch
          %267 = sbr.rel (%p265) target = $region24
        $region23: #{tpu_custom_call.1} parent=11 // pred_region
          _
        $region24: #{tpu_custom_call.1} parent=11 // pred_fallthru
          _
        // Predicated region
        $region25: #{tpu_custom_call.1} parent=11 // pred_check
          %p268 = pneg %p169
        $region26: #{tpu_custom_call.1} parent=11 // pred_check_branch
          %270 = sbr.rel (%p268) target = $region28
        $region27: #{tpu_custom_call.1} parent=11 // pred_region
          _
        $region28: #{tpu_custom_call.1} parent=11 // pred_fallthru
          _
        // Predicated region
        $region29: #{tpu_custom_call.1} parent=11 // pred_check
          %p271 = pneg %p190
        $region30: #{tpu_custom_call.1} parent=11 // pred_check_branch
          %273 = sbr.rel (%p271) target = $region32
        $region31: #{tpu_custom_call.1} parent=11 // pred_region
          _
        $region32: #{tpu_custom_call.1} parent=11 // pred_fallthru
          _
      $region12: #{tpu_custom_call.1} parent=5 // pred_fallthru
        _
      %p274 = scmp.lt.s32.totalorder %s21, 4
      // Predicated region
      $region33: #{tpu_custom_call.1} parent=5 // pred_check
        %p275 = pneg %p274
      $region34: #{tpu_custom_call.1} parent=5 // pred_check_branch
        %277 = sbr.rel (%p275) target = $region36
      $region35: #{tpu_custom_call.1} parent=5 // pred_region
        // Predicated region
        $region37: #{tpu_custom_call.1} parent=35 // pred_check
          %p278 = pneg %p53
        $region38: #{tpu_custom_call.1} parent=35 // pred_check_branch
          %280 = sbr.rel (%p278) target = $region40
        $region39: #{tpu_custom_call.1} parent=35 // pred_region
          %p281 = scmp.lt.s32.totalorder %s28, 1
          %s282 = scalar_select %p281, %s28, 1
          %s283 = smul.addr %s282, 2
          %s284 = smul.addr %s283, 4
          %s285 = scalar_lea.vmem %s0, %s284
        $region40: #{tpu_custom_call.1} parent=35 // pred_fallthru
          _
        // Predicated region
        $region41: #{tpu_custom_call.1} parent=35 // pred_check
          %p286 = pneg %p79
        $region42: #{tpu_custom_call.1} parent=35 // pred_check_branch
          %288 = sbr.rel (%p286) target = $region44
        $region43: #{tpu_custom_call.1} parent=35 // pred_region
          %p289 = scmp.lt.s32.totalorder %s28, 1
          %s290 = scalar_select %p289, %s28, 1
          %s291 = smul.addr %s290, 2
          %s292 = smul.addr %s291, 4
          %s293 = scalar_lea.vmem %s1, %s292
        $region44: #{tpu_custom_call.1} parent=35 // pred_fallthru
          _
      $region36: #{tpu_custom_call.1} parent=5 // pred_fallthru
        _
      %p294 = scmp.le.s32.totalorder 1, %s21
      %p295 = scmp.lt.s32.totalorder %s21, 5
      %p296 = pnand %p294, %p295
      %p297 = pneg %p296
      // Predicated region
      $region45: #{tpu_custom_call.1} parent=5 // pred_check
        _
      $region46: #{tpu_custom_call.1} parent=5 // pred_check_branch
        %299 = sbr.rel (%p296) target = $region48
      $region47: #{tpu_custom_call.1} parent=5 // pred_region
        %s300 = ssub.s32 %s21, 1
        %p301 = scmp.lt.s32.totalorder %s30, 1
        %s302 = scalar_select %p301, %s30, 1
        %s303 = smul.addr %s302, 2
        %s304 = smul.addr %s303, 4
        %s305 = scalar_lea.vmem %s0, %s304
        %p306 = pneg %p59
        %p307 = pneg %p56
        %p308 = scmp.lt.s32.totalorder %s30, 1
        %s309 = scalar_select %p308, %s30, 1
        %s310 = smul.addr %s309, 2
        %s311 = smul.addr %s310, 4
        %s312 = scalar_lea.vmem %s1, %s311
        %p313 = pneg %p85
        %p314 = pneg %p82
        %p315 = pneg %p106
        %p316 = pneg %p103
        %p317 = pneg %p127
        %p318 = pneg %p124
        %p319 = pneg %p148
        %p320 = pneg %p145
        %p321 = pneg %p169
        %p322 = pneg %p166
        %p323 = pneg %p190
        %p324 = pneg %p187
        %p325 = pneg %p216
        %p326 = pneg %p213
        %s327 = sand.u32 %s203, 1
        %s328 = scalar_lea.sflag [#allocation6], %s327
        %s329 = sand.u32 %s203, 1
        %s330 = smul.addr %s329, 4
        %s331 = scalar_lea.vmem [#allocation5], %s330
        %p332 = pneg %p244
        %p333 = pneg %p241
        %s334 = sand.u32 %s231, 1
        %s335 = scalar_lea.sflag [#allocation8], %s334
        %s336 = sand.u32 %s231, 1
        %s337 = smul.addr %s336, 2
        %s338 = scalar_lea.vmem [#allocation7], %s337
        %p339 = scmp.lt.s32.totalorder %s30, 1
        %s340 = scalar_select %p339, %s30, 1
        %s341 = smul.addr %s340, 2
        %s342 = smul.addr %s341, 4
        %s343 = scalar_lea.vmem %s0, %s342
        %p344 = scmp.lt.s32.totalorder %s30, 1
        %s345 = scalar_select %p344, %s30, 1
        %s346 = smul.addr %s345, 2
        %s347 = smul.addr %s346, 4
        %s348 = scalar_lea.vmem %s1, %s347
        %p350 = scmp.eq.s32.totalorder %s31, 0
        // Predicated region
        $region49: #{tpu_custom_call.1} parent=47 // pred_check
          %p351 = pneg %p350
        $region50: #{tpu_custom_call.1} parent=47 // pred_check_branch
          %353 = sbr.rel (%p351) target = $region52
        $region51: #{tpu_custom_call.1} parent=47 // pred_region
          %v354 = vld [vmem:[%s4] sm:$0xff]
          %v355 = vld [vmem:[%s348] sm:$0xff]
          %v356 = vld [vmem:[%s5] sm:$0xff]
          %358 = vset.pattern.permute.xlu0 0
          %359 = vperm.xlu0 %358, %v356
          %v360 = vpop.permute.xlu0 %359
          %v363 = vcombine.high %v355, %v355
          %vm364 = vcmask 31744
          %v366 = vsel %vm364, %v354, 0
          %vm368 = vcmask 1043456
          %v369 = vsel %vm368, %v355, 0
          %v371 = vsel %vm368, %v363, 0
          %373 = vmatprep.subr.mxu0 0.0
          %374 = vmatpush1.msra.mxu0 0.0
          %375 = vmatprep.subr.mxu0 0.0
          %376 = vmatpush1.msra.mxu0 0.0
          %377 = vmatprep.subr.mxu0 0.0
          %378 = vmatpush1.msra.mxu0 0.0
          %379 = vmatprep.subr.mxu0 0.0
          %380 = vmatpush1.msra.mxu0 0.0
          %381 = vmatprep.subr.mxu0 0.0
          %382 = vmatpush1.msra.mxu0 0.0
          %383 = vmatprep.subr.mxu0 0.0
          %384 = vmatpush1.msra.mxu0 0.0
          %385 = vmatprep.subr.mxu0 0.0
          %386 = vmatpush1.msra.mxu0 0.0
          %387 = vmatprep.subr.mxu0 0.0
          %388 = vmatpush1.msra.mxu0 0.0
          %389 = vmatprep.subr.mxu0 0.0
          %390 = vmatpush1.msra.mxu0 0.0
          %391 = vmatprep.subr.mxu0 0.0
          %392 = vmatpush1.msra.mxu0 0.0
          %393 = vmatprep.subr.mxu0 0.0
          %394 = vmatpush1.msra.mxu0 0.0
          %395 = vmatprep.subr.mxu0 0.0
          %396 = vmatpush1.msra.mxu0 0.0
          %397 = vmatprep.subr.mxu0 0.0
          %398 = vmatpush1.msra.mxu0 0.0
          %399 = vmatprep.subr.mxu0 0.0
          %400 = vmatpush1.msra.mxu0 0.0
          %401 = vmatprep.subr.mxu0 0.0
          %402 = vmatpush1.msra.mxu0 0.0
          %403 = vmatprep.subr.mxu0 %v371
          %404 = vmatpush1.msra.mxu0 %v369
          %405 = vmatprep.subr.mxu0 0.0
          %406 = vmatpush2.msra.mxu0 0.0
          %407 = vmatprep.subr.mxu0 0.0
          %408 = vmatpush2.msra.mxu0 0.0
          %409 = vmatprep.subr.mxu0 0.0
          %410 = vmatpush2.msra.mxu0 0.0
          %411 = vmatprep.subr.mxu0 0.0
          %412 = vmatpush2.msra.mxu0 0.0
          %413 = vmatprep.subr.mxu0 0.0
          %414 = vmatpush2.msra.mxu0 0.0
          %415 = vmatprep.subr.mxu0 0.0
          %416 = vmatpush2.msra.mxu0 0.0
          %417 = vmatprep.subr.mxu0 0.0
          %418 = vmatpush2.msra.mxu0 0.0
          %419 = vmatprep.subr.mxu0 0.0
          %420 = vmatpush2.msra.mxu0 0.0
          %421 = vmatprep.subr.mxu0 0.0
          %422 = vmatpush2.msra.mxu0 0.0
          %423 = vmatprep.subr.mxu0 0.0
          %424 = vmatpush2.msra.mxu0 0.0
          %425 = vmatprep.subr.mxu0 0.0
          %426 = vmatpush2.msra.mxu0 0.0
          %427 = vmatprep.subr.mxu0 0.0
          %428 = vmatpush2.msra.mxu0 0.0
          %429 = vmatprep.subr.mxu0 0.0
          %430 = vmatpush2.msra.mxu0 0.0
          %431 = vmatprep.subr.mxu0 0.0
          %432 = vmatpush2.msra.mxu0 0.0
          %433 = vmatprep.subr.mxu0 0.0
          %434 = vmatpush2.msra.mxu0 0.0
          %435 = vmatprep.subr.mxu0 0.0
          %436 = vmatpush2.msra.mxu0 0.0
          %437 = vmatprep.mubr.f32.mxu0 0.0
          %438 = vmatmul.mubr.f32.gmra.mxu0 %v366
          %v439 = vpop.f32.mrf.mxu0
          %v440 = vadd.f32 %v360, %v439
          %v441 = vpop.f32.mrf.mxu0
          %v442 = vadd.f32 %v360, %v441
          %443 = vdwg.mxu0
          %v444 = vpack.c.bf16 %v440, %v440
          %v445 = vpack.c.bf16 %v442, %v442
          %v448 = vunpack.c.l.b16 %v444
          %v449 = vunpack.c.l.b16 %v445
          %v450 = vpack.c.b16 %v449, %v448
          %452 = vst [vmem:[#allocation2] sm:$0xff] %v450
          %vm453 = vcmask 0
          %454 = vst.msk [vmem:[#allocation3] sm:$0x1] %vm453, -inf
          %455 = vst [vmem:[#allocation4] sm:$0x3f] 0.0
          %456 = vst [vmem:[#allocation4 + $0x8] sm:$0x3f] 0.0
        $region52: #{tpu_custom_call.1} parent=47 // pred_fallthru
          _
        %s457 = smul.u32 %s31, 128
        %s458 = sshra.s32 %s457, 7
        %s459 = sand.u32 %s457, 127
        %s460 = smul.addr %s458, 4
        %s461 = scalar_lea.vmem %s343, %s460
        %v462 = vld [vmem:[%s461] sm:$0xf]
        %v463 = vld [vmem:[%s2] sm:$0xff]
        %v464 = vld [vmem:[%s3] sm:$0xff]
        %466 = vset.pattern.permute.xlu0 0
        %467 = vperm.xlu0 %466, %v464
        %v468 = vpop.permute.xlu0 %467
        %vm470 = vcmask 31744
        %v472 = vsel %vm470, %v463, 0
        %vm474 = vcmask 1043456
        %v476 = vsel %vm474, %v462, 0
        %478 = vmatprep.subr.mxu0 0.0
        %479 = vmatpush1.msra.mxu0 0.0
        %480 = vmatprep.subr.mxu0 0.0
        %481 = vmatpush1.msra.mxu0 0.0
        %482 = vmatprep.subr.mxu0 0.0
        %483 = vmatpush1.msra.mxu0 0.0
        %484 = vmatprep.subr.mxu0 0.0
        %485 = vmatpush1.msra.mxu0 0.0
        %486 = vmatprep.subr.mxu0 0.0
        %487 = vmatpush1.msra.mxu0 0.0
        %488 = vmatprep.subr.mxu0 0.0
        %489 = vmatpush1.msra.mxu0 0.0
        %490 = vmatprep.subr.mxu0 0.0
        %491 = vmatpush1.msra.mxu0 0.0
        %492 = vmatprep.subr.mxu0 0.0
        %493 = vmatpush1.msra.mxu0 0.0
        %494 = vmatprep.subr.mxu0 0.0
        %495 = vmatpush1.msra.mxu0 0.0
        %496 = vmatprep.subr.mxu0 0.0
        %497 = vmatpush1.msra.mxu0 0.0
        %498 = vmatprep.subr.mxu0 0.0
        %499 = vmatpush1.msra.mxu0 0.0
        %500 = vmatprep.subr.mxu0 0.0
        %501 = vmatpush1.msra.mxu0 0.0
        %502 = vmatprep.subr.mxu0 0.0
        %503 = vmatpush1.msra.mxu0 0.0
        %504 = vmatprep.subr.mxu0 0.0
        %505 = vmatpush1.msra.mxu0 0.0
        %506 = vmatprep.subr.mxu0 0.0
        %507 = vmatpush1.msra.mxu0 0.0
        %508 = vmatprep.subr.mxu0 0.0
        %509 = vmatpush1.msra.mxu0 %v476
        %510 = vmatprep.subr.mxu0 0.0
        %511 = vmatpush2.msra.mxu0 0.0
        %512 = vmatprep.subr.mxu0 0.0
        %513 = vmatpush2.msra.mxu0 0.0
        %514 = vmatprep.subr.mxu0 0.0
        %515 = vmatpush2.msra.mxu0 0.0
        %516 = vmatprep.subr.mxu0 0.0
        %517 = vmatpush2.msra.mxu0 0.0
        %518 = vmatprep.subr.mxu0 0.0
        %519 = vmatpush2.msra.mxu0 0.0
        %520 = vmatprep.subr.mxu0 0.0
        %521 = vmatpush2.msra.mxu0 0.0
        %522 = vmatprep.subr.mxu0 0.0
        %523 = vmatpush2.msra.mxu0 0.0
        %524 = vmatprep.subr.mxu0 0.0
        %525 = vmatpush2.msra.mxu0 0.0
        %526 = vmatprep.subr.mxu0 0.0
        %527 = vmatpush2.msra.mxu0 0.0
        %528 = vmatprep.subr.mxu0 0.0
        %529 = vmatpush2.msra.mxu0 0.0
        %530 = vmatprep.subr.mxu0 0.0
        %531 = vmatpush2.msra.mxu0 0.0
        %532 = vmatprep.subr.mxu0 0.0
        %533 = vmatpush2.msra.mxu0 0.0
        %534 = vmatprep.subr.mxu0 0.0
        %535 = vmatpush2.msra.mxu0 0.0
        %536 = vmatprep.subr.mxu0 0.0
        %537 = vmatpush2.msra.mxu0 0.0
        %538 = vmatprep.subr.mxu0 0.0
        %539 = vmatpush2.msra.mxu0 0.0
        %540 = vmatprep.subr.mxu0 0.0
        %541 = vmatpush2.msra.mxu0 0.0
        %542 = vmatprep.mubr.f32.mxu0 0.0
        %543 = vmatmul.mubr.f32.gmra.mxu0 %v472
        %v544 = vpop.f32.mrf.mxu0
        %v545 = vadd.f32 %v468, %v544
        %v546 = vpop.f32.mrf.mxu0
        %547 = vdwg.mxu0
        %v548 = vpack.c.bf16 %v545, %v545
        %v549 = vld [vmem:[#allocation2] sm:$0x11]
        %550 = vxpose.xlu0.c.b16.start [1/8] %v548, 128
        %551 = vxpose.xlu0.c.b16.cont [2/8] 0, 128
        %552 = vxpose.xlu0.c.b16.cont [3/8] 0, 128
        %553 = vxpose.xlu0.c.b16.cont [4/8] 0, 128
        %554 = vxpose.xlu0.c.b16.cont [5/8] 0, 128
        %555 = vxpose.xlu0.c.b16.cont [6/8] 0, 128
        %556 = vxpose.xlu0.c.b16.cont [7/8] 0, 128
        %557 = vxpose.xlu0.c.b16.end [8/8] 0, 128
        %v558 = vpop.trf.xlu0
        %v559 = vpop.trf.xlu0
        %v560 = vpop.trf.xlu0
        %v561 = vpop.trf.xlu0
        %v562 = vpop.trf.xlu0
        %v563 = vpop.trf.xlu0
        %v564 = vpop.trf.xlu0
        %v565 = vpop.trf.xlu0
        %v567 = vunpack.c.l.b16 %v549
        %v568 = vunpack.c.h.b16 %v549
        %v569 = vpack.c.b16 %v567, %v567
        %v570 = vpack.c.b16 %v568, %v568
        %vm571 = vcmask 15360
        %v573 = vsel %vm571, %v558, 0
        %v576 = vsel %vm571, %v559, 0
        %v579 = vsel %vm571, %v560, 0
        %v582 = vsel %vm571, %v561, 0
        %v585 = vsel %vm571, %v562, 0
        %v588 = vsel %vm571, %v563, 0
        %v591 = vsel %vm571, %v564, 0
        %v594 = vsel %vm571, %v565, 0
        %vm596 = vcmask 1040384
        %v598 = vsel %vm596, %v569, 0
        %v601 = vsel %vm596, %v570, 0
        %603 = vmatprep.subr.bf16.mxu0 0
        %604 = vmatpush1.bf16.msra.mxu0 0
        %605 = vmatprep.subr.bf16.mxu0 0
        %606 = vmatpush1.bf16.msra.mxu0 0
        %607 = vmatprep.subr.bf16.mxu0 0
        %608 = vmatpush1.bf16.msra.mxu0 0
        %609 = vmatprep.subr.bf16.mxu0 0
        %610 = vmatpush1.bf16.msra.mxu0 0
        %611 = vmatprep.subr.bf16.mxu0 0
        %612 = vmatpush1.bf16.msra.mxu0 0
        %613 = vmatprep.subr.bf16.mxu0 0
        %614 = vmatpush1.bf16.msra.mxu0 0
        %615 = vmatprep.subr.bf16.mxu0 0
        %616 = vmatpush1.bf16.msra.mxu0 0
        %617 = vmatprep.subr.bf16.mxu0 %v601
        %618 = vmatpush1.bf16.msra.mxu0 %v598
        %619 = vmatprep.subr.bf16.mxu0 0
        %620 = vmatpush2.bf16.msra.mxu0 0
        %621 = vmatprep.subr.bf16.mxu0 0
        %622 = vmatpush2.bf16.msra.mxu0 0
        %623 = vmatprep.subr.bf16.mxu0 0
        %624 = vmatpush2.bf16.msra.mxu0 0
        %625 = vmatprep.subr.bf16.mxu0 0
        %626 = vmatpush2.bf16.msra.mxu0 0
        %627 = vmatprep.subr.bf16.mxu0 0
        %628 = vmatpush2.bf16.msra.mxu0 0
        %629 = vmatprep.subr.bf16.mxu0 0
        %630 = vmatpush2.bf16.msra.mxu0 0
        %631 = vmatprep.subr.bf16.mxu0 0
        %632 = vmatpush2.bf16.msra.mxu0 0
        %633 = vmatprep.subr.bf16.mxu0 0
        %634 = vmatpush2.bf16.msra.mxu0 0
        %635 = vmatprep.mubr.bf16.mxu0 0
        %636 = vmatmul.mubr.bf16.gmra.mxu0 %v573
        %v637 = vpop.f32.mrf.mxu0
        %v638 = vadd.f32 0.0, %v637
        %v639 = vpop.f32.mrf.mxu0
        %v640 = vadd.f32 0.0, %v639
        %v641 = vpop.f32.mrf.mxu0
        %v642 = vadd.f32 0.0, %v641
        %v643 = vpop.f32.mrf.mxu0
        %v644 = vadd.f32 0.0, %v643
        %645 = vmatprep.mubr.bf16.mxu0 0
        %646 = vmatmul.mubr.bf16.gmra.mxu0 %v576
        %v647 = vpop.f32.mrf.mxu0
        %v648 = vadd.f32 0.0, %v647
        %v649 = vpop.f32.mrf.mxu0
        %v650 = vadd.f32 0.0, %v649
        %v651 = vpop.f32.mrf.mxu0
        %v652 = vadd.f32 0.0, %v651
        %v653 = vpop.f32.mrf.mxu0
        %v654 = vadd.f32 0.0, %v653
        %655 = vmatprep.mubr.bf16.mxu0 0
        %656 = vmatmul.mubr.bf16.gmra.mxu0 %v579
        %v657 = vpop.f32.mrf.mxu0
        %v658 = vadd.f32 0.0, %v657
        %v659 = vpop.f32.mrf.mxu0
        %v660 = vadd.f32 0.0, %v659
        %v661 = vpop.f32.mrf.mxu0
        %v662 = vadd.f32 0.0, %v661
        %v663 = vpop.f32.mrf.mxu0
        %v664 = vadd.f32 0.0, %v663
        %665 = vmatprep.mubr.bf16.mxu0 0
        %666 = vmatmul.mubr.bf16.gmra.mxu0 %v582
        %v667 = vpop.f32.mrf.mxu0
        %v668 = vadd.f32 0.0, %v667
        %v669 = vpop.f32.mrf.mxu0
        %v670 = vadd.f32 0.0, %v669
        %v671 = vpop.f32.mrf.mxu0
        %v672 = vadd.f32 0.0, %v671
        %v673 = vpop.f32.mrf.mxu0
        %v674 = vadd.f32 0.0, %v673
        %675 = vmatprep.mubr.bf16.mxu0 0
        %676 = vmatmul.mubr.bf16.gmra.mxu0 %v585
        %v677 = vpop.f32.mrf.mxu0
        %v678 = vadd.f32 0.0, %v677
        %v679 = vpop.f32.mrf.mxu0
        %v680 = vadd.f32 0.0, %v679
        %v681 = vpop.f32.mrf.mxu0
        %v682 = vadd.f32 0.0, %v681
        %v683 = vpop.f32.mrf.mxu0
        %v684 = vadd.f32 0.0, %v683
        %685 = vmatprep.mubr.bf16.mxu0 0
        %686 = vmatmul.mubr.bf16.gmra.mxu0 %v588
        %v687 = vpop.f32.mrf.mxu0
        %v688 = vadd.f32 0.0, %v687
        %v689 = vpop.f32.mrf.mxu0
        %v690 = vadd.f32 0.0, %v689
        %v691 = vpop.f32.mrf.mxu0
        %v692 = vadd.f32 0.0, %v691
        %v693 = vpop.f32.mrf.mxu0
        %v694 = vadd.f32 0.0, %v693
        %695 = vmatprep.mubr.bf16.mxu0 0
        %696 = vmatmul.mubr.bf16.gmra.mxu0 %v591
        %v697 = vpop.f32.mrf.mxu0
        %v698 = vadd.f32 0.0, %v697
        %v699 = vpop.f32.mrf.mxu0
        %v700 = vadd.f32 0.0, %v699
        %v701 = vpop.f32.mrf.mxu0
        %v702 = vadd.f32 0.0, %v701
        %v703 = vpop.f32.mrf.mxu0
        %v704 = vadd.f32 0.0, %v703
        %705 = vmatprep.mubr.bf16.mxu0 0
        %706 = vmatmul.mubr.bf16.gmra.mxu0 %v594
        %v707 = vpop.f32.mrf.mxu0
        %v708 = vadd.f32 0.0, %v707
        %v709 = vpop.f32.mrf.mxu0
        %v710 = vadd.f32 0.0, %v709
        %v711 = vpop.f32.mrf.mxu0
        %v712 = vadd.f32 0.0, %v711
        %v713 = vpop.f32.mrf.mxu0
        %v714 = vadd.f32 0.0, %v713
        %715 = vdwg.mxu0
        %v716 = vld [vmem:[#allocation3] sm:$0x1]
        %v717 = vmax.f32 %v638, %v640
        %718 = vmax.xlane.f32.xlu0 %v717
        %v719 = vpop.xlane.xlu0 %718
        %v720 = vmax.f32 %v642, %v644
        %721 = vmax.xlane.f32.xlu0 %v720
        %v722 = vpop.xlane.xlu0 %721
        %v723 = vmax.f32 %v648, %v650
        %724 = vmax.xlane.f32.xlu0 %v723
        %v725 = vpop.xlane.xlu0 %724
        %v726 = vmax.f32 %v652, %v654
        %727 = vmax.xlane.f32.xlu0 %v726
        %v728 = vpop.xlane.xlu0 %727
        %v729 = vmax.f32 %v658, %v660
        %730 = vmax.xlane.f32.xlu0 %v729
        %v731 = vpop.xlane.xlu0 %730
        %v732 = vmax.f32 %v662, %v664
        %733 = vmax.xlane.f32.xlu0 %v732
        %v734 = vpop.xlane.xlu0 %733
        %v735 = vmax.f32 %v668, %v670
        %736 = vmax.xlane.f32.xlu0 %v735
        %v737 = vpop.xlane.xlu0 %736
        %v738 = vmax.f32 %v672, %v674
        %739 = vmax.xlane.f32.xlu0 %v738
        %v740 = vpop.xlane.xlu0 %739
        %v741 = vmax.f32 %v678, %v680
        %742 = vmax.xlane.f32.xlu0 %v741
        %v743 = vpop.xlane.xlu0 %742
        %v744 = vmax.f32 %v682, %v684
        %745 = vmax.xlane.f32.xlu0 %v744
        %v746 = vpop.xlane.xlu0 %745
        %v747 = vmax.f32 %v688, %v690
        %748 = vmax.xlane.f32.xlu0 %v747
        %v749 = vpop.xlane.xlu0 %748
        %v750 = vmax.f32 %v692, %v694
        %751 = vmax.xlane.f32.xlu0 %v750
        %v752 = vpop.xlane.xlu0 %751
        %v753 = vmax.f32 %v698, %v700
        %754 = vmax.xlane.f32.xlu0 %v753
        %v755 = vpop.xlane.xlu0 %754
        %v756 = vmax.f32 %v702, %v704
        %757 = vmax.xlane.f32.xlu0 %v756
        %v758 = vpop.xlane.xlu0 %757
        %v759 = vmax.f32 %v708, %v710
        %760 = vmax.xlane.f32.xlu0 %v759
        %v761 = vpop.xlane.xlu0 %760
        %v762 = vmax.f32 %v712, %v714
        %763 = vmax.xlane.f32.xlu0 %v762
        %v764 = vpop.xlane.xlu0 %763
        %v765 = vmax.f32 %v719, %v731
        %v766 = vmax.f32 %v722, %v734
        %v767 = vmax.f32 %v725, %v737
        %v768 = vmax.f32 %v728, %v740
        %v769 = vmax.f32 %v765, %v743
        %v770 = vmax.f32 %v766, %v746
        %v771 = vmax.f32 %v767, %v749
        %v772 = vmax.f32 %v768, %v752
        %v773 = vmax.f32 %v769, %v755
        %v774 = vmax.f32 %v770, %v758
        %v775 = vmax.f32 %v771, %v761
        %v776 = vmax.f32 %v772, %v764
        %v777 = vmax.f32 %v773, %v774
        %v778 = vmax.f32 %v775, %v776
        %v779 = vmax.f32 %v777, %v778
        %v780 = vrot.slane %v779, 4
        %v781 = vmax.f32 %v779, %v780
        %v782 = vrot.slane %v781, 2
        %v783 = vmax.f32 %v781, %v782
        %v784 = vrot.slane %v783, 1
        %v785 = vmax.f32 %v783, %v784
        %v786 = vmax.f32 %v716, %v785
        %v788 = vlaneseq
        %v789 = vshrl.u32 %v788, 7
        %v790 = vsub.s32 0, %v789
        %v791 = vrot.slane %v786, %v790
        %792 = vset.pattern.permute.xlu0 0
        %793 = vperm.xlu0 %792, %v791
        %v794 = vpop.permute.xlu0 %793
        %v796 = vsub.f32 %v638, %v794
        %v797 = vsub.f32 %v640, %v794
        %v798 = vsub.f32 %v642, %v794
        %v799 = vsub.f32 %v644, %v794
        %v800 = vsub.f32 %v648, %v794
        %v801 = vsub.f32 %v650, %v794
        %v802 = vsub.f32 %v652, %v794
        %v803 = vsub.f32 %v654, %v794
        %v804 = vsub.f32 %v658, %v794
        %v805 = vsub.f32 %v660, %v794
        %v806 = vsub.f32 %v662, %v794
        %v807 = vsub.f32 %v664, %v794
        %v808 = vsub.f32 %v668, %v794
        %v809 = vsub.f32 %v670, %v794
        %v810 = vsub.f32 %v672, %v794
        %v811 = vsub.f32 %v674, %v794
        %v812 = vsub.f32 %v678, %v794
        %v813 = vsub.f32 %v680, %v794
        %v814 = vsub.f32 %v682, %v794
        %v815 = vsub.f32 %v684, %v794
        %v816 = vsub.f32 %v688, %v794
        %v817 = vsub.f32 %v690, %v794
        %v818 = vsub.f32 %v692, %v794
        %v819 = vsub.f32 %v694, %v794
        %v820 = vsub.f32 %v698, %v794
        %v821 = vsub.f32 %v700, %v794
        %v822 = vsub.f32 %v702, %v794
        %v823 = vsub.f32 %v704, %v794
        %v824 = vsub.f32 %v708, %v794
        %v825 = vsub.f32 %v710, %v794
        %v826 = vsub.f32 %v712, %v794
        %v827 = vsub.f32 %v714, %v794
        %v828 = vmul.f32 %v796, 1.442695
        %v829 = vpow.pop %v828
        %v830 = vmul.f32 %v797, 1.442695
        %v831 = vpow.pop %v830
        %v832 = vmul.f32 %v798, 1.442695
        %v833 = vpow.pop %v832
        %v834 = vmul.f32 %v799, 1.442695
        %v835 = vpow.pop %v834
        %v836 = vmul.f32 %v800, 1.442695
        %v837 = vpow.pop %v836
        %v838 = vmul.f32 %v801, 1.442695
        %v839 = vpow.pop %v838
        %v840 = vmul.f32 %v802, 1.442695
        %v841 = vpow.pop %v840
        %v842 = vmul.f32 %v803, 1.442695
        %v843 = vpow.pop %v842
        %v844 = vmul.f32 %v804, 1.442695
        %v845 = vpow.pop %v844
        %v846 = vmul.f32 %v805, 1.442695
        %v847 = vpow.pop %v846
        %v848 = vmul.f32 %v806, 1.442695
        %v849 = vpow.pop %v848
        %v850 = vmul.f32 %v807, 1.442695
        %v851 = vpow.pop %v850
        %v852 = vmul.f32 %v808, 1.442695
        %v853 = vpow.pop %v852
        %v854 = vmul.f32 %v809, 1.442695
        %v855 = vpow.pop %v854
        %v856 = vmul.f32 %v810, 1.442695
        %v857 = vpow.pop %v856
        %v858 = vmul.f32 %v811, 1.442695
        %v859 = vpow.pop %v858
        %v860 = vmul.f32 %v812, 1.442695
        %v861 = vpow.pop %v860
        %v862 = vmul.f32 %v813, 1.442695
        %v863 = vpow.pop %v862
        %v864 = vmul.f32 %v814, 1.442695
        %v865 = vpow.pop %v864
        %v866 = vmul.f32 %v815, 1.442695
        %v867 = vpow.pop %v866
        %v868 = vmul.f32 %v816, 1.442695
        %v869 = vpow.pop %v868
        %v870 = vmul.f32 %v817, 1.442695
        %v871 = vpow.pop %v870
        %v872 = vmul.f32 %v818, 1.442695
        %v873 = vpow.pop %v872
        %v874 = vmul.f32 %v819, 1.442695
        %v875 = vpow.pop %v874
        %v876 = vmul.f32 %v820, 1.442695
        %v877 = vpow.pop %v876
        %v878 = vmul.f32 %v821, 1.442695
        %v879 = vpow.pop %v878
        %v880 = vmul.f32 %v822, 1.442695
        %v881 = vpow.pop %v880
        %v882 = vmul.f32 %v823, 1.442695
        %v883 = vpow.pop %v882
        %v884 = vmul.f32 %v824, 1.442695
        %v885 = vpow.pop %v884
        %v886 = vmul.f32 %v825, 1.442695
        %v887 = vpow.pop %v886
        %v888 = vmul.f32 %v826, 1.442695
        %v889 = vpow.pop %v888
        %v890 = vmul.f32 %v827, 1.442695
        %v891 = vpow.pop %v890
        %v892 = vpack.c.bf16 %v833, %v829
        %v893 = vpack.c.bf16 %v835, %v831
        %v894 = vpack.c.bf16 %v841, %v837
        %v895 = vpack.c.bf16 %v843, %v839
        %v896 = vpack.c.bf16 %v849, %v845
        %v897 = vpack.c.bf16 %v851, %v847
        %v898 = vpack.c.bf16 %v857, %v853
        %v899 = vpack.c.bf16 %v859, %v855
        %v900 = vpack.c.bf16 %v865, %v861
        %v901 = vpack.c.bf16 %v867, %v863
        %v902 = vpack.c.bf16 %v873, %v869
        %v903 = vpack.c.bf16 %v875, %v871
        %v904 = vpack.c.bf16 %v881, %v877
        %v905 = vpack.c.bf16 %v883, %v879
        %v906 = vpack.c.bf16 %v889, %v885
        %v907 = vpack.c.bf16 %v891, %v887
        %v908 = vld [vmem:[#allocation2] sm:$0xee]
        %v910 = vunpack.c.l.b16 %v908
        %v911 = vunpack.c.h.b16 %v908
        %v912 = vpack.c.b16 %v910, %v910
        %v913 = vpack.c.b16 %v911, %v911
        %v914 = vrot.slane %v912, 1
        %v915 = vrot.slane %v913, 1
        %918 = vmatprep.subr.bf16.mxu0 %v907
        %919 = vmatpush1.bf16.xpose.msra.mxu0 %v906
        %920 = vmatprep.subr.bf16.mxu0 %v905
        %921 = vmatpush1.bf16.xpose.msra.mxu0 %v904
        %922 = vmatprep.subr.bf16.mxu0 %v903
        %923 = vmatpush1.bf16.xpose.msra.mxu0 %v902
        %924 = vmatprep.subr.bf16.mxu0 %v901
        %925 = vmatpush1.bf16.xpose.msra.mxu0 %v900
        %926 = vmatprep.subr.bf16.mxu0 %v899
        %927 = vmatpush1.bf16.xpose.msra.mxu0 %v898
        %928 = vmatprep.subr.bf16.mxu0 %v897
        %929 = vmatpush1.bf16.xpose.msra.mxu0 %v896
        %930 = vmatprep.subr.bf16.mxu0 %v895
        %931 = vmatpush1.bf16.xpose.msra.mxu0 %v894
        %932 = vmatprep.subr.bf16.mxu0 %v893
        %933 = vmatpush1.bf16.xpose.msra.mxu0 %v892
        %934 = vmatprep.subr.bf16.mxu0 0
        %935 = vmatpush2.bf16.xpose.msra.mxu0 0
        %936 = vmatprep.subr.bf16.mxu0 0
        %937 = vmatpush2.bf16.xpose.msra.mxu0 0
        %938 = vmatprep.subr.bf16.mxu0 0
        %939 = vmatpush2.bf16.xpose.msra.mxu0 0
        %940 = vmatprep.subr.bf16.mxu0 0
        %941 = vmatpush2.bf16.xpose.msra.mxu0 0
        %942 = vmatprep.subr.bf16.mxu0 0
        %943 = vmatpush2.bf16.xpose.msra.mxu0 0
        %944 = vmatprep.subr.bf16.mxu0 0
        %945 = vmatpush2.bf16.xpose.msra.mxu0 0
        %946 = vmatprep.subr.bf16.mxu0 0
        %947 = vmatpush2.bf16.xpose.msra.mxu0 0
        %948 = vmatprep.subr.bf16.mxu0 0
        %949 = vmatpush2.bf16.xpose.msra.mxu0 0
        %950 = vmatprep.mubr.bf16.mxu0 %v915
        %951 = vmatmul.mubr.bf16.gmra.mxu0 %v914
        %v952 = vpop.f32.mrf.mxu0
        %v953 = vadd.f32 0.0, %v952
        %v954 = vpop.f32.mrf.mxu0
        %v955 = vpop.f32.mrf.mxu0
        %v956 = vpop.f32.mrf.mxu0
        %957 = vdwg.mxu0
        %v958 = vrcp.pop %v953
        %v959 = vmul.f32 1.0, %v958
        %s960 = smul.addr %s458, 4
        %s961 = scalar_lea.vmem %s348, %s960
        %v962 = vld [vmem:[%s961] sm:$0xf]
        %v963 = vlaneseq
        %v964 = vshrl.u32 %v963, 7
        %v965 = vsub.s32 4, %v964
        %v966 = vrot.slane %v959, %v965
        %v967 = vmul.f32 %v953, %v966
        %v968 = vadd.f32 %v962, %v967
        %v969 = vld [vmem:[%s6] sm:$0xf]
        %971 = vset.pattern.permute.xlu0 0
        %972 = vperm.xlu0 %971, %v969
        %v973 = vpop.permute.xlu0 %972
        %v975 = vadd.f32 %v968, %v973
        %v976 = vpack.c.bf16 %v975, %v975
        %977 = vst [vmem:[%s338] sm:$0x3] %v976
        %v978 = vsub.f32 %v716, %v786
        %v979 = vmul.f32 %v978, 1.442695
        %v980 = vpow.pop %v979
        %v981 = vld [vmem:[#allocation4] sm:$0x3f]
        %v982 = vld [vmem:[#allocation4 + $0x8] sm:$0x3f]
        %v984 = vlaneseq
        %v985 = vshrl.u32 %v984, 7
        %v986 = vsub.s32 0, %v985
        %v987 = vrot.slane %v980, %v986
        %988 = vset.pattern.permute.xlu0 0
        %989 = vperm.xlu0 %988, %v987
        %v990 = vpop.permute.xlu0 %989
        %v992 = vmul.f32 %v981, %v990
        %v993 = vmul.f32 %v982, %v990
        %v995 = vrot.slane %v548, 1
        %997 = vmatprep.subr.bf16.mxu0 %v907
        %998 = vmatpush1.bf16.msra.mxu0 %v906
        %999 = vmatprep.subr.bf16.mxu0 %v905
        %1000 = vmatpush1.bf16.msra.mxu0 %v904
        %1001 = vmatprep.subr.bf16.mxu0 %v903
        %1002 = vmatpush1.bf16.msra.mxu0 %v902
        %1003 = vmatprep.subr.bf16.mxu0 %v901
        %1004 = vmatpush1.bf16.msra.mxu0 %v900
        %1005 = vmatprep.subr.bf16.mxu0 %v899
        %1006 = vmatpush1.bf16.msra.mxu0 %v898
        %1007 = vmatprep.subr.bf16.mxu0 %v897
        %1008 = vmatpush1.bf16.msra.mxu0 %v896
        %1009 = vmatprep.subr.bf16.mxu0 %v895
        %1010 = vmatpush1.bf16.msra.mxu0 %v894
        %1011 = vmatprep.subr.bf16.mxu0 %v893
        %1012 = vmatpush1.bf16.msra.mxu0 %v892
        %1013 = vmatprep.subr.bf16.mxu0 0
        %1014 = vmatpush2.bf16.msra.mxu0 0
        %1015 = vmatprep.subr.bf16.mxu0 0
        %1016 = vmatpush2.bf16.msra.mxu0 0
        %1017 = vmatprep.subr.bf16.mxu0 0
        %1018 = vmatpush2.bf16.msra.mxu0 0
        %1019 = vmatprep.subr.bf16.mxu0 0
        %1020 = vmatpush2.bf16.msra.mxu0 0
        %1021 = vmatprep.subr.bf16.mxu0 0
        %1022 = vmatpush2.bf16.msra.mxu0 0
        %1023 = vmatprep.subr.bf16.mxu0 0
        %1024 = vmatpush2.bf16.msra.mxu0 0
        %1025 = vmatprep.subr.bf16.mxu0 0
        %1026 = vmatpush2.bf16.msra.mxu0 0
        %1027 = vmatprep.subr.bf16.mxu0 0
        %1028 = vmatpush2.bf16.msra.mxu0 0
        %1029 = vmatprep.mubr.bf16.mxu0 0
        %1030 = vmatmul.mubr.bf16.gmra.mxu0 %v995
        %v1031 = vpop.f32.mrf.mxu0
        %v1032 = vadd.f32 0.0, %v1031
        %v1033 = vpop.f32.mrf.mxu0
        %v1034 = vadd.f32 0.0, %v1033
        %v1035 = vpop.f32.mrf.mxu0
        %v1036 = vpop.f32.mrf.mxu0
        %1037 = vdwg.mxu0
        %v1038 = vadd.f32 %v992, %v1032
        %v1039 = vadd.f32 %v993, %v1034
        %1040 = vst [vmem:[#allocation4] sm:$0x3f] %v1038
        %1041 = vst [vmem:[#allocation4 + $0x8] sm:$0x3f] %v1039
        %vm1042 = vcmask 0
        %1043 = vst.msk [vmem:[#allocation3] sm:$0x1] %vm1042, %v786
        %p1044 = scmp.eq.s32.totalorder %s31, 1
        // Predicated region
        $region53: #{tpu_custom_call.1} parent=47 // pred_check
          %p1045 = pneg %p1044
        $region54: #{tpu_custom_call.1} parent=47 // pred_check_branch
          %1047 = sbr.rel (%p1045) target = $region56
        $region55: #{tpu_custom_call.1} parent=47 // pred_region
          %s1048 = scalar_lea.vmem [#allocation4], 4
          %v1049 = vld [vmem:[%s1048] ss:$8 sm:$0x3]
          %v1050 = vrcp.pop %v1049
          %v1051 = vmul.f32 1.0, %v1050
          %v1052 = vld [vmem:[%s343] sm:$0xff]
          %v1053 = vld [vmem:[#allocation4] sm:$0xf]
          %v1054 = vld [vmem:[#allocation4 + $0x8] sm:$0xf]
          %v1056 = vlaneseq
          %v1057 = vshrl.u32 %v1056, 7
          %v1058 = vsub.s32 0, %v1057
          %v1059 = vrot.slane %v1051, %v1058
          %v1060 = vlaneseq
          %v1061 = vshrl.u32 %v1060, 7
          %v1062 = vsub.s32 1, %v1061
          %v1063 = vrot.slane %v1051, %v1062
          %v1066 = vmul.f32 %v1053, %v1059
          %v1067 = vmul.f32 %v1054, %v1063
          %v1070 = vcombine.low %v1066, %v1067
          %v1072 = vadd.f32 %v1052, %v1070
          %v1073 = vld [vmem:[%s6] sm:$0xf]
          %1075 = vset.pattern.permute.xlu0 0
          %1076 = vperm.xlu0 %1075, %v1073
          %v1077 = vpop.permute.xlu0 %1076
          %v1079 = vunpack.c.l.s4 839922192
          %v1080 = vunpack.c.0.s8 %v1079
          %v1081 = vlaneseq
          %v1082 = vshrl.u32 %v1081, 7
          %v1083 = vsub.s32 %v1080, %v1082
          %v1084 = vrot.slane %v1077, %v1083
          %v1086 = vadd.f32 %v1072, %v1084
          %v1088 = vcombine.high %v1086, %v1086
          %v1090 = vpack.c.bf16 %v1086, %v1086
          %v1091 = vpack.c.bf16 %v1088, %v1088
          %v1094 = vcombine.low %v1090, %v1091
          %v1096 = vunpack.c.l.s4 1983009808
          %v1097 = vunpack.c.0.s8 %v1096
          %v1098 = vlaneseq
          %v1099 = vshrl.u32 %v1098, 7
          %v1100 = vsub.s32 %v1097, %v1099
          %v1101 = vrot.slane %v1094, %v1100
          %1103 = vst [vmem:[%s331] sm:$0xf] %v1101
        $region56: #{tpu_custom_call.1} parent=47 // pred_fallthru
          _
        %s1104 = sand.u32 %s203, 1
        %s1105 = scalar_lea.sflag [#allocation6], %s1104
        %s1106 = sand.u32 %s203, 1
        %s1107 = smul.addr %s1106, 4
        %s1108 = scalar_lea.vmem [#allocation5], %s1107
        %s1109 = sand.u32 %s231, 1
        %s1110 = scalar_lea.sflag [#allocation8], %s1109
        %s1111 = sand.u32 %s231, 1
        %s1112 = smul.addr %s1111, 2
        %s1113 = scalar_lea.vmem [#allocation7], %s1112
        // Predicated region
        $region57: #{tpu_custom_call.1} parent=47 // pred_check
          %p1114 = pneg %p213
        $region58: #{tpu_custom_call.1} parent=47 // pred_check_branch
          %1116 = sbr.rel (%p1114) target = $region60
        $region59: #{tpu_custom_call.1} parent=47 // pred_region
          %s1118 = ssub.s32 64, 64
          %1119 = vsyncadd %s1105, %s1118
          %s1120 = smul.addr %s30, 2
          %s1121 = smul.addr %s1120, 32
          %s1122 = scalar_lea.hbm %s7, %s1121
          %s1124 = sshll.u32 %s1108, 4
          %s1125 = int_to_ptr.vmem [resolvable:$true] %s1124
          %1127 = dma.vmem_to_hbm [thread:$0]  %s1125, 64, %s1122, %s1105
        $region60: #{tpu_custom_call.1} parent=47 // pred_fallthru
          _
        // Predicated region
        $region61: #{tpu_custom_call.1} parent=47 // pred_check
          %p1128 = pneg %p241
        $region62: #{tpu_custom_call.1} parent=47 // pred_check_branch
          %1130 = sbr.rel (%p1128) target = $region64
        $region63: #{tpu_custom_call.1} parent=47 // pred_region
          %s1132 = ssub.s32 32, 32
          %1133 = vsyncadd %s1110, %s1132
          %s1134 = smul.addr %s30, 2
          %s1135 = sadd.s32 %s31, %s1134
          %s1136 = smul.addr %s1135, 32
          %s1137 = scalar_lea.hbm %s8, %s1136
          %s1139 = sshll.u32 %s1113, 4
          %s1140 = int_to_ptr.vmem [resolvable:$true] %s1139
          %1142 = dma.vmem_to_hbm [thread:$0]  %s1140, 32, %s1137, %s1110
        $region64: #{tpu_custom_call.1} parent=47 // pred_fallthru
          _
      $region48: #{tpu_custom_call.1} parent=5 // pred_fallthru
        _
      %p1143 = scmp.le.s32.totalorder 2, %s21
      // Predicated region
      $region65: #{tpu_custom_call.1} parent=5 // pred_check
        %p1144 = pneg %p1143
      $region66: #{tpu_custom_call.1} parent=5 // pred_check_branch
        %1146 = sbr.rel (%p1144) target = $region68
      $region67: #{tpu_custom_call.1} parent=5 // pred_region
        %s1147 = ssub.s32 %s21, 2
        // Predicated region
        $region69: #{tpu_custom_call.1} parent=67 // pred_check
          %p1148 = pneg %p219
        $region70: #{tpu_custom_call.1} parent=67 // pred_check_branch
          %1150 = sbr.rel (%p1148) target = $region72
        $region71: #{tpu_custom_call.1} parent=67 // pred_region
          %s1151 = sand.u32 %s204, 1
          %s1152 = scalar_lea.sflag [#allocation6], %s1151
          %s1153 = sand.u32 %s204, 1
          %s1154 = smul.addr %s1153, 4
          %s1155 = scalar_lea.vmem [#allocation5], %s1154
          %1156 = dma.done %s1152, 64
        $region72: #{tpu_custom_call.1} parent=67 // pred_fallthru
          _
        // Predicated region
        $region73: #{tpu_custom_call.1} parent=67 // pred_check
          %p1157 = pneg %p247
        $region74: #{tpu_custom_call.1} parent=67 // pred_check_branch
          %1159 = sbr.rel (%p1157) target = $region76
        $region75: #{tpu_custom_call.1} parent=67 // pred_region
          %s1160 = sand.u32 %s232, 1
          %s1161 = scalar_lea.sflag [#allocation8], %s1160
          %s1162 = sand.u32 %s232, 1
          %s1163 = smul.addr %s1162, 2
          %s1164 = scalar_lea.vmem [#allocation7], %s1163
          %1165 = dma.done %s1161, 32
        $region76: #{tpu_custom_call.1} parent=67 // pred_fallthru
          _
      $region68: #{tpu_custom_call.1} parent=5 // pred_fallthru
        _
    $region6: #{tpu_custom_call.1} parent=1 // loop_footer
      %s25 = sadd.s32 1, %s21
    $region7: #{tpu_custom_call.1} parent=1 // loop_footer_branch
      %20 = sbr.rel target = $region3
    $region8: #{tpu_custom_call.1} parent=1 // loop_exit
      _
    %1166 = vsyncpa [#allocation6], 1
    %s1167 = scalar_lea.sflag [#allocation6], 1
    %1168 = vsyncpa %s1167, 1
    %1169 = vsyncpa [#allocation8], 1
    %s1170 = scalar_lea.sflag [#allocation8], 1
    %1171 = vsyncpa %s1170, 1

</llo_original>
